<compile_context>
chip_gen: v6e
topology: v6e:2x2x1
jax: 0.10.0
libtpu: 0.0.40
codegen_flags: <defaults>
</compile_context>

<pallas_src>
import functools

import jax
import jax.numpy as jnp
from jax.experimental import pallas as pl
from jax.experimental.pallas import tpu as pltpu


# ------------------------------ fused kernel ------------------------------ #

def _cnn_fused_kernel(p1_ref, w1_ref, b1_ref, w2_ref, b2_ref, w3_ref, b3_ref,
                      fw1_ref, fb1_ref, fw2_ref, fb2_ref, o_ref,
                      *, bt, oh1, ow1, c1, oh2, ow2):
    f32, bf16 = jnp.float32, jnp.bfloat16

    # ---- conv1: rows (n, h1), block-diag kron(I_OW1, W1) -> cols (w1, c1) ----
    y1 = jnp.dot(p1_ref[...], w1_ref[...], preferred_element_type=f32)
    y1 = jnp.maximum(y1 + b1_ref[...], 0.0).astype(bf16)      # (bt*OH1, OW1*C1)
    # Leading-dim split only (layout preserving): (bt*OH1, OW1*C1) -> (bt, OH1, OW1*C1)
    a1 = y1.reshape(bt, oh1, ow1 * c1)

    # ---- conv2 (k=4, s=2): ONE matmul over all OH2*OW2 output positions ----
    # Each lane block p=(oh2,ow2) holds the patch in (kh, kw, cin) order; the
    # block-diagonal kron(I_9, W2) weight emits columns in (oh2, ow2, c2) order,
    # which is exactly conv3's flattened-K order -> no post-matmul rearrange.
    rows = [a1[:, h, :] for h in range(oh1)]                   # OH1 x (bt, OW1*C1)
    blocks = []
    for oh in range(oh2):
        for ow in range(ow2):
            blocks.append(jnp.concatenate(
                [rows[oh * 2 + i][:, (ow * 2) * c1:(ow * 2 + 4) * c1]
                 for i in range(4)], axis=-1))                 # (bt, 4*4*C1)
    lhs2 = jnp.concatenate(blocks, axis=-1)                    # (bt, 9*4*4*C1)
    y2 = jnp.dot(lhs2, w2_ref[...], preferred_element_type=f32)
    a2 = jnp.maximum(y2 + b2_ref[...], 0.0).astype(bf16)       # (bt, 9*C2)

    # ---- conv3 (k=3, s=1) consumes the whole 3x3 map -> single matmul ----
    y3 = jnp.dot(a2, w3_ref[...], preferred_element_type=f32)
    y3 = jnp.maximum(y3 + b3_ref[...], 0.0).astype(bf16)       # (bt, C3); Flatten = id

    # ---- FC head ----
    hh = jnp.dot(y3, fw1_ref[...], preferred_element_type=f32)
    hh = jnp.maximum(hh + fb1_ref[...], 0.0).astype(bf16)
    yy = jnp.dot(hh, fw2_ref[...], preferred_element_type=f32)
    o_ref[...] = jnp.maximum(yy + fb2_ref[...], 0.0).astype(o_ref.dtype)


# ------------------------------ host wrapper ------------------------------ #

def cnn_forward(x, params, *, tile_n=128):
    """x: (N, Cin, H, W) float32 raw pixels -> (N, hidden) float32.

    tile_n: per-step batch tile.  128 keeps the p1 tile at ~4 MiB bf16
    (double-buffered 8 MiB) which fits the 32 MiB scoped-VMEM default on all
    generations; re-derive (smaller) only if other residents grow on v7x.
    """
    n, cin, h, w = x.shape
    oh1, ow1 = (h - 8) // 4 + 1, (w - 8) // 4 + 1
    oh2, ow2 = (oh1 - 4) // 2 + 1, (ow1 - 4) // 2 + 1
    oh3, ow3 = oh2 - 2, ow2 - 2
    # Fused kernel assumes conv3 consumes the full 3x3 map (true for the
    # standard Atari-style obs sizes this module is used with, e.g. 36x36).
    assert oh2 == 3 and ow2 == 3 and oh3 == 1 and ow3 == 1, (oh1, oh2, oh3)

    c1 = params["w1"].shape[1]
    kdim = params["w1"].shape[0]               # 8*8*Cin
    hidden = params["fw2"].shape[1]
    npos2 = oh2 * ow2                          # 9

    # Host prep (fused by XLA with /255 + bf16 cast): conv1 patch matrix with
    # rows ordered (n, h1) and columns ordered (w1, kh, kw, cin) so that a
    # batch BlockSpec is a contiguous row range and the block-diag conv1
    # weight emits a channel-last output.
    xn = jnp.transpose(x, (0, 2, 3, 1)).astype(jnp.float32) * (1.0 / 255.0)
    cols = [xn[:, i:i + 4 * (oh1 - 1) + 1:4, j:j + 4 * (ow1 - 1) + 1:4, :]
            for i in range(8) for j in range(8)]
    pat = jnp.stack(cols, axis=3)              # (N, OH1, OW1, 64, Cin)
    p1 = pat.reshape(n * oh1, ow1 * kdim).astype(jnp.bfloat16)
    # TODO(synk): internalize this im2col (DMA raw bf16 NHWC tiles and slice
    # in-kernel) to cut host-prep HBM traffic at large PPO batch sizes.

    # Block-diagonal / tiled weight layouts (exact: x1.0 multiplies in f32).
    w1_bd = jnp.kron(jnp.eye(ow1, dtype=jnp.float32),
                     params["w1"].astype(jnp.float32)).astype(jnp.bfloat16)
    b1_t = jnp.tile(params["b1"], (1, ow1))
    w2_bd = jnp.kron(jnp.eye(npos2, dtype=jnp.float32),
                     params["w2"].astype(jnp.float32)).astype(jnp.bfloat16)
    b2_t = jnp.tile(params["b2"], (1, npos2))

    # Batch tiling (+ zero padding to a multiple of the tile).
    bt = min(tile_n, n)
    n_pad = ((n + bt - 1) // bt) * bt
    if n_pad != n:
        p1 = jnp.pad(p1, ((0, (n_pad - n) * oh1), (0, 0)))
    num_tiles = n_pad // bt

    kernel = functools.partial(_cnn_fused_kernel, bt=bt, oh1=oh1, ow1=ow1,
                               c1=c1, oh2=oh2, ow2=ow2)

    args = (p1, w1_bd, b1_t, w2_bd, b2_t, params["w3"], params["b3"],
            params["fw1"], params["fb1"], params["fw2"], params["fb2"])

    def _resident(a):  # weights/biases: same block every grid step (no re-DMA)
        return pl.BlockSpec(a.shape, lambda i: (0, 0))

    in_specs = [pl.BlockSpec((bt * oh1, ow1 * kdim), lambda i: (i, 0))]
    in_specs += [_resident(a) for a in args[1:]]

    out = pl.pallas_call(
        kernel,
        out_shape=jax.ShapeDtypeStruct((n_pad, hidden), jnp.float32),
        grid_spec=pltpu.PrefetchScalarGridSpec(
            num_scalar_prefetch=0,
            grid=(num_tiles,),
            in_specs=in_specs,
            out_specs=pl.BlockSpec((bt, hidden), lambda i: (i, 0))),
        compiler_params=pltpu.CompilerParams(
            dimension_semantics=("parallel",)),
    )(*args)
    return out[:n]


# ------------------------------ params ------------------------------------ #

def make_params(key, in_channels, hidden_size_cnn, hidden_size):
    """Synthetic deterministic weights in the flattened matmul layouts."""
    c1, c2 = hidden_size_cnn, hidden_size_cnn * 2
    ks = jax.random.split(key, 5)

    def conv_w(k, cout, cin, kk):
        # torch layout (Cout, Cin, kh, kw) -> matmul layout (kh*kw*Cin, Cout),
        # K ordered (kh, kw, cin).
        wt = jax.random.normal(k, (cout, cin, kk, kk), jnp.float32)
        wt = wt / jnp.sqrt(float(cin * kk * kk))
        return jnp.transpose(wt, (2, 3, 1, 0)).reshape(kk * kk * cin, cout).astype(jnp.bfloat16)

    def fc_w(k, fin, fout):
        wt = jax.random.normal(k, (fout, fin), jnp.float32) / jnp.sqrt(float(fin))
        return wt.T.astype(jnp.bfloat16)           # torch (out,in) -> (in,out)

    return {
        "w1": conv_w(ks[0], c1, in_channels, 8), "b1": jnp.zeros((1, c1), jnp.float32),
        "w2": conv_w(ks[1], c2, c1, 4),          "b2": jnp.zeros((1, c2), jnp.float32),
        "w3": conv_w(ks[2], c2, c2, 3),          "b3": jnp.zeros((1, c2), jnp.float32),
        "fw1": fc_w(ks[3], c2, hidden_size),     "fb1": jnp.zeros((1, hidden_size), jnp.float32),
        "fw2": fc_w(ks[4], hidden_size, hidden_size),
        "fb2": jnp.zeros((1, hidden_size), jnp.float32),
    }


# --------------------------- pure-JAX reference ---------------------------- #

def _reference_forward(x, params):
    """Straightforward im2col/matmul forward in f32 (independent data path)."""
    def im2col_nhwc(a, k, s):
        n, h, w, c = a.shape
        oh, ow = (h - k) // s + 1, (w - k) // s + 1
        cols = [a[:, i:i + s * (oh - 1) + 1:s, j:j + s * (ow - 1) + 1:s, :]
                for i in range(k) for j in range(k)]
        return jnp.stack(cols, axis=3).reshape(n, oh, ow, k * k * c)

    a = jnp.transpose(x, (0, 2, 3, 1)) / 255.0
    for wk, bk, k, s in (("w1", "b1", 8, 4), ("w2", "b2", 4, 2), ("w3", "b3", 3, 1)):
        p = im2col_nhwc(a, k, s)
        wmat = params[wk].astype(jnp.float32)
        a = jnp.maximum(jnp.einsum("nhwk,kc->nhwc", p, wmat) + params[bk], 0.0)
    a = a.reshape(a.shape[0], -1)
    a = jnp.maximum(a @ params["fw1"].astype(jnp.float32) + params["fb1"], 0.0)
    a = jnp.maximum(a @ params["fw2"].astype(jnp.float32) + params["fb2"], 0.0)
    return a


# -------------------------------- driver ----------------------------------- #

if __name__ == "__main__":
    # Config consistent with the module: obs_shape=(4, 36, 36),
    # hidden_size_cnn=8, hidden_size=32.  Conv chain: 36 -> 8 -> 3 -> 1, flat=16.
    batch = 2
    in_channels, H, W = 4, 36, 36
    hidden_size_cnn, hidden_size = 8, 32

    key = jax.random.PRNGKey(0)
    kx, kp = jax.random.split(key)
    x = jax.random.uniform(kx, (batch, in_channels, H, W), jnp.float32,
                           minval=0.0, maxval=255.0)
    params = make_params(kp, in_channels, hidden_size_cnn, hidden_size)

    fwd = jax.jit(cnn_forward)
    out = fwd(x, params)
    jax.block_until_ready(out)

    assert out.shape == (batch, hidden_size), out.shape
    ref = _reference_forward(x, params)
    assert bool(jnp.all(jnp.isfinite(out)))
    assert bool(jnp.allclose(out, ref, rtol=5e-2, atol=2e-2)), "mismatch vs reference"
    print("KERNEL_OK")
</pallas_src>

<mosaic_0001>
module attributes {stable_mosaic.version = 11 : i64} {
  func.func @_cnn_fused_kernel(%arg0: i32, %arg1: memref<16x2048xbf16, #tpu.memory_space<vmem>>, %arg2: memref<2048x64xbf16, #tpu.memory_space<vmem>>, %arg3: memref<1x64xf32, #tpu.memory_space<vmem>>, %arg4: memref<1152x144xbf16, #tpu.memory_space<vmem>>, %arg5: memref<1x144xf32, #tpu.memory_space<vmem>>, %arg6: memref<144x16xbf16, #tpu.memory_space<vmem>>, %arg7: memref<1x16xf32, #tpu.memory_space<vmem>>, %arg8: memref<16x32xbf16, #tpu.memory_space<vmem>>, %arg9: memref<1x32xf32, #tpu.memory_space<vmem>>, %arg10: memref<32x32xbf16, #tpu.memory_space<vmem>>, %arg11: memref<1x32xf32, #tpu.memory_space<vmem>>, %arg12: memref<2x32xf32, #tpu.memory_space<vmem>>) attributes {dimension_semantics = [#tpu.dimension_semantics<parallel>], iteration_bounds = array<i64: 1>, scalar_prefetch = 0 : i64, scratch_operands = 0 : i64, tpu.core_type = #tpu.core_type<tc>, window_params = [{transform_indices = @transform_0, window_bounds = array<i64: 16, 2048>}, {pipeline_mode = #tpu.pipeline_mode<synchronous>, transform_indices = @transform_1, window_bounds = array<i64: 2048, 64>}, {pipeline_mode = #tpu.pipeline_mode<synchronous>, transform_indices = @transform_2, window_bounds = array<i64: 1, 64>}, {pipeline_mode = #tpu.pipeline_mode<synchronous>, transform_indices = @transform_3, window_bounds = array<i64: 1152, 144>}, {pipeline_mode = #tpu.pipeline_mode<synchronous>, transform_indices = @transform_4, window_bounds = array<i64: 1, 144>}, {pipeline_mode = #tpu.pipeline_mode<synchronous>, transform_indices = @transform_5, window_bounds = array<i64: 144, 16>}, {pipeline_mode = #tpu.pipeline_mode<synchronous>, transform_indices = @transform_6, window_bounds = array<i64: 1, 16>}, {pipeline_mode = #tpu.pipeline_mode<synchronous>, transform_indices = @transform_7, window_bounds = array<i64: 16, 32>}, {pipeline_mode = #tpu.pipeline_mode<synchronous>, transform_indices = @transform_8, window_bounds = array<i64: 1, 32>}, {pipeline_mode = #tpu.pipeline_mode<synchronous>, transform_indices = @transform_9, window_bounds = array<i64: 32, 32>}, {pipeline_mode = #tpu.pipeline_mode<synchronous>, transform_indices = @transform_10, window_bounds = array<i64: 1, 32>}, {transform_indices = @transform_11, window_bounds = array<i64: 2, 32>}]} {
    %c0 = arith.constant 0 : index
    %c0_0 = arith.constant 0 : index
    %0 = vector.load %arg1[%c0, %c0_0] : memref<16x2048xbf16, #tpu.memory_space<vmem>>, vector<16x2048xbf16>
    %c0_1 = arith.constant 0 : index
    %c0_2 = arith.constant 0 : index
    %1 = vector.load %arg2[%c0_1, %c0_2] : memref<2048x64xbf16, #tpu.memory_space<vmem>>, vector<2048x64xbf16>
    %cst = arith.constant dense<0.000000e+00> : vector<16x64xf32>
    %2 = tpu.matmul %0, %1, %cst {dimension_numbers = #tpu.dot_dimension_numbers<[1], [0], [0], [1], [0, 0, 1, 1], [], []>} : vector<16x2048xbf16>, vector<2048x64xbf16>, vector<16x64xf32> -> vector<16x64xf32>
    %c0_3 = arith.constant 0 : index
    %c0_4 = arith.constant 0 : index
    %3 = vector.load %arg3[%c0_3, %c0_4] : memref<1x64xf32, #tpu.memory_space<vmem>>, vector<1x64xf32>
    %4 = vector.broadcast %3 : vector<1x64xf32> to vector<16x64xf32>
    %5 = arith.addf %2, %4 : vector<16x64xf32>
    %cst_5 = arith.constant 0.000000e+00 : f32
    %6 = vector.broadcast %cst_5 : f32 to vector<16x64xf32>
    %7 = arith.maximumf %5, %6 : vector<16x64xf32>
    %8 = arith.truncf %7 : vector<16x64xf32> to vector<16x64xbf16>
    %9 = vector.shape_cast %8 : vector<16x64xbf16> to vector<2x8x64xbf16>
    %10 = vector.extract_strided_slice %9 {offsets = [0, 0, 0], sizes = [2, 1, 64], strides = [1, 1, 1]} : vector<2x8x64xbf16> to vector<2x1x64xbf16>
    %11 = vector.shape_cast %10 : vector<2x1x64xbf16> to vector<2x64xbf16>
    %12 = vector.extract_strided_slice %9 {offsets = [0, 1, 0], sizes = [2, 1, 64], strides = [1, 1, 1]} : vector<2x8x64xbf16> to vector<2x1x64xbf16>
    %13 = vector.shape_cast %12 : vector<2x1x64xbf16> to vector<2x64xbf16>
    %14 = vector.extract_strided_slice %9 {offsets = [0, 2, 0], sizes = [2, 1, 64], strides = [1, 1, 1]} : vector<2x8x64xbf16> to vector<2x1x64xbf16>
    %15 = vector.shape_cast %14 : vector<2x1x64xbf16> to vector<2x64xbf16>
    %16 = vector.extract_strided_slice %9 {offsets = [0, 3, 0], sizes = [2, 1, 64], strides = [1, 1, 1]} : vector<2x8x64xbf16> to vector<2x1x64xbf16>
    %17 = vector.shape_cast %16 : vector<2x1x64xbf16> to vector<2x64xbf16>
    %18 = vector.extract_strided_slice %9 {offsets = [0, 4, 0], sizes = [2, 1, 64], strides = [1, 1, 1]} : vector<2x8x64xbf16> to vector<2x1x64xbf16>
    %19 = vector.shape_cast %18 : vector<2x1x64xbf16> to vector<2x64xbf16>
    %20 = vector.extract_strided_slice %9 {offsets = [0, 5, 0], sizes = [2, 1, 64], strides = [1, 1, 1]} : vector<2x8x64xbf16> to vector<2x1x64xbf16>
    %21 = vector.shape_cast %20 : vector<2x1x64xbf16> to vector<2x64xbf16>
    %22 = vector.extract_strided_slice %9 {offsets = [0, 6, 0], sizes = [2, 1, 64], strides = [1, 1, 1]} : vector<2x8x64xbf16> to vector<2x1x64xbf16>
    %23 = vector.shape_cast %22 : vector<2x1x64xbf16> to vector<2x64xbf16>
    %24 = vector.extract_strided_slice %9 {offsets = [0, 7, 0], sizes = [2, 1, 64], strides = [1, 1, 1]} : vector<2x8x64xbf16> to vector<2x1x64xbf16>
    %25 = vector.shape_cast %24 : vector<2x1x64xbf16> to vector<2x64xbf16>
    %26 = vector.extract_strided_slice %11 {offsets = [0, 0], sizes = [2, 32], strides = [1, 1]} : vector<2x64xbf16> to vector<2x32xbf16>
    %27 = vector.extract_strided_slice %13 {offsets = [0, 0], sizes = [2, 32], strides = [1, 1]} : vector<2x64xbf16> to vector<2x32xbf16>
    %28 = vector.extract_strided_slice %15 {offsets = [0, 0], sizes = [2, 32], strides = [1, 1]} : vector<2x64xbf16> to vector<2x32xbf16>
    %29 = vector.extract_strided_slice %17 {offsets = [0, 0], sizes = [2, 32], strides = [1, 1]} : vector<2x64xbf16> to vector<2x32xbf16>
    %30 = tpu.concatenate %26, %27, %28, %29 in 1 : vector<2x32xbf16>, vector<2x32xbf16>, vector<2x32xbf16>, vector<2x32xbf16> -> vector<2x128xbf16>
    %31 = vector.extract_strided_slice %11 {offsets = [0, 16], sizes = [2, 32], strides = [1, 1]} : vector<2x64xbf16> to vector<2x32xbf16>
    %32 = vector.extract_strided_slice %13 {offsets = [0, 16], sizes = [2, 32], strides = [1, 1]} : vector<2x64xbf16> to vector<2x32xbf16>
    %33 = vector.extract_strided_slice %15 {offsets = [0, 16], sizes = [2, 32], strides = [1, 1]} : vector<2x64xbf16> to vector<2x32xbf16>
    %34 = vector.extract_strided_slice %17 {offsets = [0, 16], sizes = [2, 32], strides = [1, 1]} : vector<2x64xbf16> to vector<2x32xbf16>
    %35 = tpu.concatenate %31, %32, %33, %34 in 1 : vector<2x32xbf16>, vector<2x32xbf16>, vector<2x32xbf16>, vector<2x32xbf16> -> vector<2x128xbf16>
    %36 = vector.extract_strided_slice %11 {offsets = [0, 32], sizes = [2, 32], strides = [1, 1]} : vector<2x64xbf16> to vector<2x32xbf16>
    %37 = vector.extract_strided_slice %13 {offsets = [0, 32], sizes = [2, 32], strides = [1, 1]} : vector<2x64xbf16> to vector<2x32xbf16>
    %38 = vector.extract_strided_slice %15 {offsets = [0, 32], sizes = [2, 32], strides = [1, 1]} : vector<2x64xbf16> to vector<2x32xbf16>
    %39 = vector.extract_strided_slice %17 {offsets = [0, 32], sizes = [2, 32], strides = [1, 1]} : vector<2x64xbf16> to vector<2x32xbf16>
    %40 = tpu.concatenate %36, %37, %38, %39 in 1 : vector<2x32xbf16>, vector<2x32xbf16>, vector<2x32xbf16>, vector<2x32xbf16> -> vector<2x128xbf16>
    %41 = vector.extract_strided_slice %15 {offsets = [0, 0], sizes = [2, 32], strides = [1, 1]} : vector<2x64xbf16> to vector<2x32xbf16>
    %42 = vector.extract_strided_slice %17 {offsets = [0, 0], sizes = [2, 32], strides = [1, 1]} : vector<2x64xbf16> to vector<2x32xbf16>
    %43 = vector.extract_strided_slice %19 {offsets = [0, 0], sizes = [2, 32], strides = [1, 1]} : vector<2x64xbf16> to vector<2x32xbf16>
    %44 = vector.extract_strided_slice %21 {offsets = [0, 0], sizes = [2, 32], strides = [1, 1]} : vector<2x64xbf16> to vector<2x32xbf16>
    %45 = tpu.concatenate %41, %42, %43, %44 in 1 : vector<2x32xbf16>, vector<2x32xbf16>, vector<2x32xbf16>, vector<2x32xbf16> -> vector<2x128xbf16>
    %46 = vector.extract_strided_slice %15 {offsets = [0, 16], sizes = [2, 32], strides = [1, 1]} : vector<2x64xbf16> to vector<2x32xbf16>
    %47 = vector.extract_strided_slice %17 {offsets = [0, 16], sizes = [2, 32], strides = [1, 1]} : vector<2x64xbf16> to vector<2x32xbf16>
    %48 = vector.extract_strided_slice %19 {offsets = [0, 16], sizes = [2, 32], strides = [1, 1]} : vector<2x64xbf16> to vector<2x32xbf16>
    %49 = vector.extract_strided_slice %21 {offsets = [0, 16], sizes = [2, 32], strides = [1, 1]} : vector<2x64xbf16> to vector<2x32xbf16>
    %50 = tpu.concatenate %46, %47, %48, %49 in 1 : vector<2x32xbf16>, vector<2x32xbf16>, vector<2x32xbf16>, vector<2x32xbf16> -> vector<2x128xbf16>
    %51 = vector.extract_strided_slice %15 {offsets = [0, 32], sizes = [2, 32], strides = [1, 1]} : vector<2x64xbf16> to vector<2x32xbf16>
    %52 = vector.extract_strided_slice %17 {offsets = [0, 32], sizes = [2, 32], strides = [1, 1]} : vector<2x64xbf16> to vector<2x32xbf16>
    %53 = vector.extract_strided_slice %19 {offsets = [0, 32], sizes = [2, 32], strides = [1, 1]} : vector<2x64xbf16> to vector<2x32xbf16>
    %54 = vector.extract_strided_slice %21 {offsets = [0, 32], sizes = [2, 32], strides = [1, 1]} : vector<2x64xbf16> to vector<2x32xbf16>
    %55 = tpu.concatenate %51, %52, %53, %54 in 1 : vector<2x32xbf16>, vector<2x32xbf16>, vector<2x32xbf16>, vector<2x32xbf16> -> vector<2x128xbf16>
    %56 = vector.extract_strided_slice %19 {offsets = [0, 0], sizes = [2, 32], strides = [1, 1]} : vector<2x64xbf16> to vector<2x32xbf16>
    %57 = vector.extract_strided_slice %21 {offsets = [0, 0], sizes = [2, 32], strides = [1, 1]} : vector<2x64xbf16> to vector<2x32xbf16>
    %58 = vector.extract_strided_slice %23 {offsets = [0, 0], sizes = [2, 32], strides = [1, 1]} : vector<2x64xbf16> to vector<2x32xbf16>
    %59 = vector.extract_strided_slice %25 {offsets = [0, 0], sizes = [2, 32], strides = [1, 1]} : vector<2x64xbf16> to vector<2x32xbf16>
    %60 = tpu.concatenate %56, %57, %58, %59 in 1 : vector<2x32xbf16>, vector<2x32xbf16>, vector<2x32xbf16>, vector<2x32xbf16> -> vector<2x128xbf16>
    %61 = vector.extract_strided_slice %19 {offsets = [0, 16], sizes = [2, 32], strides = [1, 1]} : vector<2x64xbf16> to vector<2x32xbf16>
    %62 = vector.extract_strided_slice %21 {offsets = [0, 16], sizes = [2, 32], strides = [1, 1]} : vector<2x64xbf16> to vector<2x32xbf16>
    %63 = vector.extract_strided_slice %23 {offsets = [0, 16], sizes = [2, 32], strides = [1, 1]} : vector<2x64xbf16> to vector<2x32xbf16>
    %64 = vector.extract_strided_slice %25 {offsets = [0, 16], sizes = [2, 32], strides = [1, 1]} : vector<2x64xbf16> to vector<2x32xbf16>
    %65 = tpu.concatenate %61, %62, %63, %64 in 1 : vector<2x32xbf16>, vector<2x32xbf16>, vector<2x32xbf16>, vector<2x32xbf16> -> vector<2x128xbf16>
    %66 = vector.extract_strided_slice %19 {offsets = [0, 32], sizes = [2, 32], strides = [1, 1]} : vector<2x64xbf16> to vector<2x32xbf16>
    %67 = vector.extract_strided_slice %21 {offsets = [0, 32], sizes = [2, 32], strides = [1, 1]} : vector<2x64xbf16> to vector<2x32xbf16>
    %68 = vector.extract_strided_slice %23 {offsets = [0, 32], sizes = [2, 32], strides = [1, 1]} : vector<2x64xbf16> to vector<2x32xbf16>
    %69 = vector.extract_strided_slice %25 {offsets = [0, 32], sizes = [2, 32], strides = [1, 1]} : vector<2x64xbf16> to vector<2x32xbf16>
    %70 = tpu.concatenate %66, %67, %68, %69 in 1 : vector<2x32xbf16>, vector<2x32xbf16>, vector<2x32xbf16>, vector<2x32xbf16> -> vector<2x128xbf16>
    %71 = tpu.concatenate %30, %35, %40, %45, %50, %55, %60, %65, %70 in 1 : vector<2x128xbf16>, vector<2x128xbf16>, vector<2x128xbf16>, vector<2x128xbf16>, vector<2x128xbf16>, vector<2x128xbf16>, vector<2x128xbf16>, vector<2x128xbf16>, vector<2x128xbf16> -> vector<2x1152xbf16>
    %c0_6 = arith.constant 0 : index
    %c0_7 = arith.constant 0 : index
    %72 = vector.load %arg4[%c0_6, %c0_7] : memref<1152x144xbf16, #tpu.memory_space<vmem>>, vector<1152x144xbf16>
    %cst_8 = arith.constant dense<0.000000e+00> : vector<2x144xf32>
    %73 = tpu.matmul %71, %72, %cst_8 {dimension_numbers = #tpu.dot_dimension_numbers<[1], [0], [0], [1], [0, 0, 1, 1], [], []>} : vector<2x1152xbf16>, vector<1152x144xbf16>, vector<2x144xf32> -> vector<2x144xf32>
    %c0_9 = arith.constant 0 : index
    %c0_10 = arith.constant 0 : index
    %74 = vector.load %arg5[%c0_9, %c0_10] : memref<1x144xf32, #tpu.memory_space<vmem>>, vector<1x144xf32>
    %75 = vector.broadcast %74 : vector<1x144xf32> to vector<2x144xf32>
    %76 = arith.addf %73, %75 : vector<2x144xf32>
    %cst_11 = arith.constant 0.000000e+00 : f32
    %77 = vector.broadcast %cst_11 : f32 to vector<2x144xf32>
    %78 = arith.maximumf %76, %77 : vector<2x144xf32>
    %79 = arith.truncf %78 : vector<2x144xf32> to vector<2x144xbf16>
    %c0_12 = arith.constant 0 : index
    %c0_13 = arith.constant 0 : index
    %80 = vector.load %arg6[%c0_12, %c0_13] : memref<144x16xbf16, #tpu.memory_space<vmem>>, vector<144x16xbf16>
    %cst_14 = arith.constant dense<0.000000e+00> : vector<2x16xf32>
    %81 = tpu.matmul %79, %80, %cst_14 {dimension_numbers = #tpu.dot_dimension_numbers<[1], [0], [0], [1], [0, 0, 1, 1], [], []>} : vector<2x144xbf16>, vector<144x16xbf16>, vector<2x16xf32> -> vector<2x16xf32>
    %c0_15 = arith.constant 0 : index
    %c0_16 = arith.constant 0 : index
    %82 = vector.load %arg7[%c0_15, %c0_16] : memref<1x16xf32, #tpu.memory_space<vmem>>, vector<1x16xf32>
    %83 = vector.broadcast %82 : vector<1x16xf32> to vector<2x16xf32>
    %84 = arith.addf %81, %83 : vector<2x16xf32>
    %cst_17 = arith.constant 0.000000e+00 : f32
    %85 = vector.broadcast %cst_17 : f32 to vector<2x16xf32>
    %86 = arith.maximumf %84, %85 : vector<2x16xf32>
    %87 = arith.truncf %86 : vector<2x16xf32> to vector<2x16xbf16>
    %c0_18 = arith.constant 0 : index
    %c0_19 = arith.constant 0 : index
    %88 = vector.load %arg8[%c0_18, %c0_19] : memref<16x32xbf16, #tpu.memory_space<vmem>>, vector<16x32xbf16>
    %cst_20 = arith.constant dense<0.000000e+00> : vector<2x32xf32>
    %89 = tpu.matmul %87, %88, %cst_20 {dimension_numbers = #tpu.dot_dimension_numbers<[1], [0], [0], [1], [0, 0, 1, 1], [], []>} : vector<2x16xbf16>, vector<16x32xbf16>, vector<2x32xf32> -> vector<2x32xf32>
    %c0_21 = arith.constant 0 : index
    %c0_22 = arith.constant 0 : index
    %90 = vector.load %arg9[%c0_21, %c0_22] : memref<1x32xf32, #tpu.memory_space<vmem>>, vector<1x32xf32>
    %91 = vector.broadcast %90 : vector<1x32xf32> to vector<2x32xf32>
    %92 = arith.addf %89, %91 : vector<2x32xf32>
    %cst_23 = arith.constant 0.000000e+00 : f32
    %93 = vector.broadcast %cst_23 : f32 to vector<2x32xf32>
    %94 = arith.maximumf %92, %93 : vector<2x32xf32>
    %95 = arith.truncf %94 : vector<2x32xf32> to vector<2x32xbf16>
    %c0_24 = arith.constant 0 : index
    %c0_25 = arith.constant 0 : index
    %96 = vector.load %arg10[%c0_24, %c0_25] : memref<32x32xbf16, #tpu.memory_space<vmem>>, vector<32x32xbf16>
    %cst_26 = arith.constant dense<0.000000e+00> : vector<2x32xf32>
    %97 = tpu.matmul %95, %96, %cst_26 {dimension_numbers = #tpu.dot_dimension_numbers<[1], [0], [0], [1], [0, 0, 1, 1], [], []>} : vector<2x32xbf16>, vector<32x32xbf16>, vector<2x32xf32> -> vector<2x32xf32>
    %c0_27 = arith.constant 0 : index
    %c0_28 = arith.constant 0 : index
    %98 = vector.load %arg11[%c0_27, %c0_28] : memref<1x32xf32, #tpu.memory_space<vmem>>, vector<1x32xf32>
    %99 = vector.broadcast %98 : vector<1x32xf32> to vector<2x32xf32>
    %100 = arith.addf %97, %99 : vector<2x32xf32>
    %cst_29 = arith.constant 0.000000e+00 : f32
    %101 = vector.broadcast %cst_29 : f32 to vector<2x32xf32>
    %102 = arith.maximumf %100, %101 : vector<2x32xf32>
    %c0_30 = arith.constant 0 : index
    %c0_31 = arith.constant 0 : index
    %103 = vector.load %arg12[%c0_30, %c0_31] : memref<2x32xf32, #tpu.memory_space<vmem>>, vector<2x32xf32>
    tpu.vector_store %arg12[%c0_30, %c0_31], %102 {strides = array<i32>} : memref<2x32xf32, #tpu.memory_space<vmem>>, vector<2x32xf32>,
    return
  }
  func.func @transform_0(%arg0: i32) -> (i32, i32) {
    %c0_i32 = arith.constant 0 : i32
    %c0_i32_0 = arith.constant 0 : i32
    return %arg0, %c0_i32 : i32, i32
  }
  func.func @transform_1(%arg0: i32) -> (i32, i32) {
    %c0_i32 = arith.constant 0 : i32
    %c0_i32_0 = arith.constant 0 : i32
    %c0_i32_1 = arith.constant 0 : i32
    return %c0_i32, %c0_i32_0 : i32, i32
  }
  func.func @transform_2(%arg0: i32) -> (i32, i32) {
    %c0_i32 = arith.constant 0 : i32
    %c0_i32_0 = arith.constant 0 : i32
    %c0_i32_1 = arith.constant 0 : i32
    return %c0_i32, %c0_i32_0 : i32, i32
  }
  func.func @transform_3(%arg0: i32) -> (i32, i32) {
    %c0_i32 = arith.constant 0 : i32
    %c0_i32_0 = arith.constant 0 : i32
    %c0_i32_1 = arith.constant 0 : i32
    return %c0_i32, %c0_i32_0 : i32, i32
  }
  func.func @transform_4(%arg0: i32) -> (i32, i32) {
    %c0_i32 = arith.constant 0 : i32
    %c0_i32_0 = arith.constant 0 : i32
    %c0_i32_1 = arith.constant 0 : i32
    return %c0_i32, %c0_i32_0 : i32, i32
  }
  func.func @transform_5(%arg0: i32) -> (i32, i32) {
    %c0_i32 = arith.constant 0 : i32
    %c0_i32_0 = arith.constant 0 : i32
    %c0_i32_1 = arith.constant 0 : i32
    return %c0_i32, %c0_i32_0 : i32, i32
  }
  func.func @transform_6(%arg0: i32) -> (i32, i32) {
    %c0_i32 = arith.constant 0 : i32
    %c0_i32_0 = arith.constant 0 : i32
    %c0_i32_1 = arith.constant 0 : i32
    return %c0_i32, %c0_i32_0 : i32, i32
  }
  func.func @transform_7(%arg0: i32) -> (i32, i32) {
    %c0_i32 = arith.constant 0 : i32
    %c0_i32_0 = arith.constant 0 : i32
    %c0_i32_1 = arith.constant 0 : i32
    return %c0_i32, %c0_i32_0 : i32, i32
  }
  func.func @transform_8(%arg0: i32) -> (i32, i32) {
    %c0_i32 = arith.constant 0 : i32
    %c0_i32_0 = arith.constant 0 : i32
    %c0_i32_1 = arith.constant 0 : i32
    return %c0_i32, %c0_i32_0 : i32, i32
  }
  func.func @transform_9(%arg0: i32) -> (i32, i32) {
    %c0_i32 = arith.constant 0 : i32
    %c0_i32_0 = arith.constant 0 : i32
    %c0_i32_1 = arith.constant 0 : i32
    return %c0_i32, %c0_i32_0 : i32, i32
  }
  func.func @transform_10(%arg0: i32) -> (i32, i32) {
    %c0_i32 = arith.constant 0 : i32
    %c0_i32_0 = arith.constant 0 : i32
    %c0_i32_1 = arith.constant 0 : i32
    return %c0_i32, %c0_i32_0 : i32, i32
  }
  func.func @transform_11(%arg0: i32) -> (i32, i32) {
    %c0_i32 = arith.constant 0 : i32
    %c0_i32_0 = arith.constant 0 : i32
    return %arg0, %c0_i32 : i32, i32
  }
}

</mosaic_0001>

<llo_original>
// kernel: cnn_forward.1
$region0: #{cnn_forward.1}
  #allocation0 [shape = 'u32[]', space=smem, size = 0x4, offset = 0x4, fixed_abs, tag = 'smem constant byte address 0x4 - core index']
  #allocation1 [shape = 'u32[144,128]{1,0:T(1,128)}', space=vmem, size = 0x12000, scoped, tag = 'internal scratch']
  %s0 = inlined_call_operand.vmem [shape: bf16[16,2048], index: 0, kind: input, shape index: {}]
  %s1 = inlined_call_operand.vmem [shape: bf16[2048,64], index: 1, kind: input, shape index: {}]
  %s2 = inlined_call_operand.vmem [shape: f32[1,64], index: 2, kind: input, shape index: {}]
  %s3 = inlined_call_operand.vmem [shape: bf16[1152,144], index: 3, kind: input, shape index: {}]
  %s4 = inlined_call_operand.vmem [shape: f32[1,144], index: 4, kind: input, shape index: {}]
  %s5 = inlined_call_operand.vmem [shape: bf16[144,16], index: 5, kind: input, shape index: {}]
  %s6 = inlined_call_operand.vmem [shape: f32[1,16], index: 6, kind: input, shape index: {}]
  %s7 = inlined_call_operand.vmem [shape: bf16[16,32], index: 7, kind: input, shape index: {}]
  %s8 = inlined_call_operand.vmem [shape: f32[1,32], index: 8, kind: input, shape index: {}]
  %s9 = inlined_call_operand.vmem [shape: bf16[32,32], index: 9, kind: input, shape index: {}]
  %s10 = inlined_call_operand.vmem [shape: f32[1,32], index: 10, kind: input, shape index: {}]
  %s11 = inlined_call_operand.hbm [shape: f32[2,32], index: 11, kind: output, shape index: {}]
  %s12 = sld [smem:[#allocation0]]
  $region54: #{cnn_forward.1} parent=0
    _
  %s14 = ssub.s32 1, %s12
  %s15 = scalar_select 0, %s14, %s12
  $region1: #{cnn_forward.1} parent=0
    #allocation2 [shape = 'u8[1024]{0}', space=vmem, size = 0x400, scoped, tag = 'output window, operand 0, single buffered']
    #allocation3 [shape = 's32[1]{0}', space=sflag, size = 0x4, scoped, tag = 'scoped memory for cnn_forward.1']
    %16 = vsyncpa [#allocation3], 0
    // Predicated region
    $region2: #{cnn_forward.1} parent=1 // pred_check
      _
    $region3: #{cnn_forward.1} parent=1 // pred_check_branch
      %18 = sbr.rel (0) target = $region5
    $region4: #{cnn_forward.1} parent=1 // pred_region
      _
    $region5: #{cnn_forward.1} parent=1 // pred_fallthru
      _
    // Predicated region
    $region6: #{cnn_forward.1} parent=1 // pred_check
      _
    $region7: #{cnn_forward.1} parent=1 // pred_check_branch
      %20 = sbr.rel (0) target = $region9
    $region8: #{cnn_forward.1} parent=1 // pred_region
      _
    $region9: #{cnn_forward.1} parent=1 // pred_fallthru
      _
    // Predicated region
    $region10: #{cnn_forward.1} parent=1 // pred_check
      _
    $region11: #{cnn_forward.1} parent=1 // pred_check_branch
      %22 = sbr.rel (0) target = $region13
    $region12: #{cnn_forward.1} parent=1 // pred_region
      _
    $region13: #{cnn_forward.1} parent=1 // pred_fallthru
      _
    // Predicated region
    $region14: #{cnn_forward.1} parent=1 // pred_check
      _
    $region15: #{cnn_forward.1} parent=1 // pred_check_branch
      %24 = sbr.rel (0) target = $region17
    $region16: #{cnn_forward.1} parent=1 // pred_region
      _
    $region17: #{cnn_forward.1} parent=1 // pred_fallthru
      _
    // Predicated region
    $region18: #{cnn_forward.1} parent=1 // pred_check
      _
    $region19: #{cnn_forward.1} parent=1 // pred_check_branch
      %26 = sbr.rel (0) target = $region21
    $region20: #{cnn_forward.1} parent=1 // pred_region
      _
    $region21: #{cnn_forward.1} parent=1 // pred_fallthru
      _
    // Predicated region
    $region22: #{cnn_forward.1} parent=1 // pred_check
      _
    $region23: #{cnn_forward.1} parent=1 // pred_check_branch
      %28 = sbr.rel (0) target = $region25
    $region24: #{cnn_forward.1} parent=1 // pred_region
      _
    $region25: #{cnn_forward.1} parent=1 // pred_fallthru
      _
    // Predicated region
    $region26: #{cnn_forward.1} parent=1 // pred_check
      _
    $region27: #{cnn_forward.1} parent=1 // pred_check_branch
      %30 = sbr.rel (0) target = $region29
    $region28: #{cnn_forward.1} parent=1 // pred_region
      _
    $region29: #{cnn_forward.1} parent=1 // pred_fallthru
      _
    // Predicated region
    $region30: #{cnn_forward.1} parent=1 // pred_check
      _
    $region31: #{cnn_forward.1} parent=1 // pred_check_branch
      %32 = sbr.rel (0) target = $region33
    $region32: #{cnn_forward.1} parent=1 // pred_region
      _
    $region33: #{cnn_forward.1} parent=1 // pred_fallthru
      _
    // Predicated region
    $region34: #{cnn_forward.1} parent=1 // pred_check
      _
    $region35: #{cnn_forward.1} parent=1 // pred_check_branch
      %34 = sbr.rel (0) target = $region37
    $region36: #{cnn_forward.1} parent=1 // pred_region
      _
    $region37: #{cnn_forward.1} parent=1 // pred_fallthru
      _
    // Predicated region
    $region38: #{cnn_forward.1} parent=1 // pred_check
      _
    $region39: #{cnn_forward.1} parent=1 // pred_check_branch
      %36 = sbr.rel (0) target = $region41
    $region40: #{cnn_forward.1} parent=1 // pred_region
      _
    $region41: #{cnn_forward.1} parent=1 // pred_fallthru
      _
    // Predicated region
    $region42: #{cnn_forward.1} parent=1 // pred_check
      _
    $region43: #{cnn_forward.1} parent=1 // pred_check_branch
      %38 = sbr.rel (0) target = $region45
    $region44: #{cnn_forward.1} parent=1 // pred_region
      _
    $region45: #{cnn_forward.1} parent=1 // pred_fallthru
      _
    %v40 = vld [vmem:[%s0] sm:$0xff]
    %v41 = vld [vmem:[%s0 + $0x8] sm:$0xff]
    %v42 = vld [vmem:[%s0 + $0x10] sm:$0xff]
    %v43 = vld [vmem:[%s0 + $0x18] sm:$0xff]
    %v44 = vld [vmem:[%s0 + $0x20] sm:$0xff]
    %v45 = vld [vmem:[%s0 + $0x28] sm:$0xff]
    %v46 = vld [vmem:[%s0 + $0x30] sm:$0xff]
    %v47 = vld [vmem:[%s0 + $0x38] sm:$0xff]
    %v48 = vld [vmem:[%s0 + $0x40] sm:$0xff]
    %v49 = vld [vmem:[%s0 + $0x48] sm:$0xff]
    %v50 = vld [vmem:[%s0 + $0x50] sm:$0xff]
    %v51 = vld [vmem:[%s0 + $0x58] sm:$0xff]
    %v52 = vld [vmem:[%s0 + $0x60] sm:$0xff]
    %v53 = vld [vmem:[%s0 + $0x68] sm:$0xff]
    %v54 = vld [vmem:[%s0 + $0x70] sm:$0xff]
    %v55 = vld [vmem:[%s0 + $0x78] sm:$0xff]
    %v56 = vld [vmem:[%s1] sm:$0xf]
    %v57 = vld [vmem:[%s1 + $0x4] sm:$0xf]
    %v58 = vld [vmem:[%s1 + $0x8] sm:$0xf]
    %v59 = vld [vmem:[%s1 + $0xc] sm:$0xf]
    %v60 = vld [vmem:[%s1 + $0x10] sm:$0xf]
    %v61 = vld [vmem:[%s1 + $0x14] sm:$0xf]
    %v62 = vld [vmem:[%s1 + $0x18] sm:$0xf]
    %v63 = vld [vmem:[%s1 + $0x1c] sm:$0xf]
    %v64 = vld [vmem:[%s1 + $0x20] sm:$0xf]
    %v65 = vld [vmem:[%s1 + $0x24] sm:$0xf]
    %v66 = vld [vmem:[%s1 + $0x28] sm:$0xf]
    %v67 = vld [vmem:[%s1 + $0x2c] sm:$0xf]
    %v68 = vld [vmem:[%s1 + $0x30] sm:$0xf]
    %v69 = vld [vmem:[%s1 + $0x34] sm:$0xf]
    %v70 = vld [vmem:[%s1 + $0x38] sm:$0xf]
    %v71 = vld [vmem:[%s1 + $0x3c] sm:$0xf]
    %v72 = vld [vmem:[%s1 + $0x40] sm:$0xf]
    %v73 = vld [vmem:[%s1 + $0x44] sm:$0xf]
    %v74 = vld [vmem:[%s1 + $0x48] sm:$0xf]
    %v75 = vld [vmem:[%s1 + $0x4c] sm:$0xf]
    %v76 = vld [vmem:[%s1 + $0x50] sm:$0xf]
    %v77 = vld [vmem:[%s1 + $0x54] sm:$0xf]
    %v78 = vld [vmem:[%s1 + $0x58] sm:$0xf]
    %v79 = vld [vmem:[%s1 + $0x5c] sm:$0xf]
    %v80 = vld [vmem:[%s1 + $0x60] sm:$0xf]
    %v81 = vld [vmem:[%s1 + $0x64] sm:$0xf]
    %v82 = vld [vmem:[%s1 + $0x68] sm:$0xf]
    %v83 = vld [vmem:[%s1 + $0x6c] sm:$0xf]
    %v84 = vld [vmem:[%s1 + $0x70] sm:$0xf]
    %v85 = vld [vmem:[%s1 + $0x74] sm:$0xf]
    %v86 = vld [vmem:[%s1 + $0x78] sm:$0xf]
    %v87 = vld [vmem:[%s1 + $0x7c] sm:$0xf]
    %v88 = vld [vmem:[%s1 + $0x80] sm:$0xf]
    %v89 = vld [vmem:[%s1 + $0x84] sm:$0xf]
    %v90 = vld [vmem:[%s1 + $0x88] sm:$0xf]
    %v91 = vld [vmem:[%s1 + $0x8c] sm:$0xf]
    %v92 = vld [vmem:[%s1 + $0x90] sm:$0xf]
    %v93 = vld [vmem:[%s1 + $0x94] sm:$0xf]
    %v94 = vld [vmem:[%s1 + $0x98] sm:$0xf]
    %v95 = vld [vmem:[%s1 + $0x9c] sm:$0xf]
    %v96 = vld [vmem:[%s1 + $0xa0] sm:$0xf]
    %v97 = vld [vmem:[%s1 + $0xa4] sm:$0xf]
    %v98 = vld [vmem:[%s1 + $0xa8] sm:$0xf]
    %v99 = vld [vmem:[%s1 + $0xac] sm:$0xf]
    %v100 = vld [vmem:[%s1 + $0xb0] sm:$0xf]
    %v101 = vld [vmem:[%s1 + $0xb4] sm:$0xf]
    %v102 = vld [vmem:[%s1 + $0xb8] sm:$0xf]
    %v103 = vld [vmem:[%s1 + $0xbc] sm:$0xf]
    %v104 = vld [vmem:[%s1 + $0xc0] sm:$0xf]
    %v105 = vld [vmem:[%s1 + $0xc4] sm:$0xf]
    %v106 = vld [vmem:[%s1 + $0xc8] sm:$0xf]
    %v107 = vld [vmem:[%s1 + $0xcc] sm:$0xf]
    %v108 = vld [vmem:[%s1 + $0xd0] sm:$0xf]
    %v109 = vld [vmem:[%s1 + $0xd4] sm:$0xf]
    %v110 = vld [vmem:[%s1 + $0xd8] sm:$0xf]
    %v111 = vld [vmem:[%s1 + $0xdc] sm:$0xf]
    %v112 = vld [vmem:[%s1 + $0xe0] sm:$0xf]
    %v113 = vld [vmem:[%s1 + $0xe4] sm:$0xf]
    %v114 = vld [vmem:[%s1 + $0xe8] sm:$0xf]
    %v115 = vld [vmem:[%s1 + $0xec] sm:$0xf]
    %v116 = vld [vmem:[%s1 + $0xf0] sm:$0xf]
    %v117 = vld [vmem:[%s1 + $0xf4] sm:$0xf]
    %v118 = vld [vmem:[%s1 + $0xf8] sm:$0xf]
    %v119 = vld [vmem:[%s1 + $0xfc] sm:$0xf]
    %v120 = vld [vmem:[%s1 + $0x100] sm:$0xf]
    %v121 = vld [vmem:[%s1 + $0x104] sm:$0xf]
    %v122 = vld [vmem:[%s1 + $0x108] sm:$0xf]
    %v123 = vld [vmem:[%s1 + $0x10c] sm:$0xf]
    %v124 = vld [vmem:[%s1 + $0x110] sm:$0xf]
    %v125 = vld [vmem:[%s1 + $0x114] sm:$0xf]
    %v126 = vld [vmem:[%s1 + $0x118] sm:$0xf]
    %v127 = vld [vmem:[%s1 + $0x11c] sm:$0xf]
    %v128 = vld [vmem:[%s1 + $0x120] sm:$0xf]
    %v129 = vld [vmem:[%s1 + $0x124] sm:$0xf]
    %v130 = vld [vmem:[%s1 + $0x128] sm:$0xf]
    %v131 = vld [vmem:[%s1 + $0x12c] sm:$0xf]
    %v132 = vld [vmem:[%s1 + $0x130] sm:$0xf]
    %v133 = vld [vmem:[%s1 + $0x134] sm:$0xf]
    %v134 = vld [vmem:[%s1 + $0x138] sm:$0xf]
    %v135 = vld [vmem:[%s1 + $0x13c] sm:$0xf]
    %v136 = vld [vmem:[%s1 + $0x140] sm:$0xf]
    %v137 = vld [vmem:[%s1 + $0x144] sm:$0xf]
    %v138 = vld [vmem:[%s1 + $0x148] sm:$0xf]
    %v139 = vld [vmem:[%s1 + $0x14c] sm:$0xf]
    %v140 = vld [vmem:[%s1 + $0x150] sm:$0xf]
    %v141 = vld [vmem:[%s1 + $0x154] sm:$0xf]
    %v142 = vld [vmem:[%s1 + $0x158] sm:$0xf]
    %v143 = vld [vmem:[%s1 + $0x15c] sm:$0xf]
    %v144 = vld [vmem:[%s1 + $0x160] sm:$0xf]
    %v145 = vld [vmem:[%s1 + $0x164] sm:$0xf]
    %v146 = vld [vmem:[%s1 + $0x168] sm:$0xf]
    %v147 = vld [vmem:[%s1 + $0x16c] sm:$0xf]
    %v148 = vld [vmem:[%s1 + $0x170] sm:$0xf]
    %v149 = vld [vmem:[%s1 + $0x174] sm:$0xf]
    %v150 = vld [vmem:[%s1 + $0x178] sm:$0xf]
    %v151 = vld [vmem:[%s1 + $0x17c] sm:$0xf]
    %v152 = vld [vmem:[%s1 + $0x180] sm:$0xf]
    %v153 = vld [vmem:[%s1 + $0x184] sm:$0xf]
    %v154 = vld [vmem:[%s1 + $0x188] sm:$0xf]
    %v155 = vld [vmem:[%s1 + $0x18c] sm:$0xf]
    %v156 = vld [vmem:[%s1 + $0x190] sm:$0xf]
    %v157 = vld [vmem:[%s1 + $0x194] sm:$0xf]
    %v158 = vld [vmem:[%s1 + $0x198] sm:$0xf]
    %v159 = vld [vmem:[%s1 + $0x19c] sm:$0xf]
    %v160 = vld [vmem:[%s1 + $0x1a0] sm:$0xf]
    %v161 = vld [vmem:[%s1 + $0x1a4] sm:$0xf]
    %v162 = vld [vmem:[%s1 + $0x1a8] sm:$0xf]
    %v163 = vld [vmem:[%s1 + $0x1ac] sm:$0xf]
    %v164 = vld [vmem:[%s1 + $0x1b0] sm:$0xf]
    %v165 = vld [vmem:[%s1 + $0x1b4] sm:$0xf]
    %v166 = vld [vmem:[%s1 + $0x1b8] sm:$0xf]
    %v167 = vld [vmem:[%s1 + $0x1bc] sm:$0xf]
    %v168 = vld [vmem:[%s1 + $0x1c0] sm:$0xf]
    %v169 = vld [vmem:[%s1 + $0x1c4] sm:$0xf]
    %v170 = vld [vmem:[%s1 + $0x1c8] sm:$0xf]
    %v171 = vld [vmem:[%s1 + $0x1cc] sm:$0xf]
    %v172 = vld [vmem:[%s1 + $0x1d0] sm:$0xf]
    %v173 = vld [vmem:[%s1 + $0x1d4] sm:$0xf]
    %v174 = vld [vmem:[%s1 + $0x1d8] sm:$0xf]
    %v175 = vld [vmem:[%s1 + $0x1dc] sm:$0xf]
    %v176 = vld [vmem:[%s1 + $0x1e0] sm:$0xf]
    %v177 = vld [vmem:[%s1 + $0x1e4] sm:$0xf]
    %v178 = vld [vmem:[%s1 + $0x1e8] sm:$0xf]
    %v179 = vld [vmem:[%s1 + $0x1ec] sm:$0xf]
    %v180 = vld [vmem:[%s1 + $0x1f0] sm:$0xf]
    %v181 = vld [vmem:[%s1 + $0x1f4] sm:$0xf]
    %v182 = vld [vmem:[%s1 + $0x1f8] sm:$0xf]
    %v183 = vld [vmem:[%s1 + $0x1fc] sm:$0xf]
    %v184 = vld [vmem:[%s1 + $0x200] sm:$0xf]
    %v185 = vld [vmem:[%s1 + $0x204] sm:$0xf]
    %v186 = vld [vmem:[%s1 + $0x208] sm:$0xf]
    %v187 = vld [vmem:[%s1 + $0x20c] sm:$0xf]
    %v188 = vld [vmem:[%s1 + $0x210] sm:$0xf]
    %v189 = vld [vmem:[%s1 + $0x214] sm:$0xf]
    %v190 = vld [vmem:[%s1 + $0x218] sm:$0xf]
    %v191 = vld [vmem:[%s1 + $0x21c] sm:$0xf]
    %v192 = vld [vmem:[%s1 + $0x220] sm:$0xf]
    %v193 = vld [vmem:[%s1 + $0x224] sm:$0xf]
    %v194 = vld [vmem:[%s1 + $0x228] sm:$0xf]
    %v195 = vld [vmem:[%s1 + $0x22c] sm:$0xf]
    %v196 = vld [vmem:[%s1 + $0x230] sm:$0xf]
    %v197 = vld [vmem:[%s1 + $0x234] sm:$0xf]
    %v198 = vld [vmem:[%s1 + $0x238] sm:$0xf]
    %v199 = vld [vmem:[%s1 + $0x23c] sm:$0xf]
    %v200 = vld [vmem:[%s1 + $0x240] sm:$0xf]
    %v201 = vld [vmem:[%s1 + $0x244] sm:$0xf]
    %v202 = vld [vmem:[%s1 + $0x248] sm:$0xf]
    %v203 = vld [vmem:[%s1 + $0x24c] sm:$0xf]
    %v204 = vld [vmem:[%s1 + $0x250] sm:$0xf]
    %v205 = vld [vmem:[%s1 + $0x254] sm:$0xf]
    %v206 = vld [vmem:[%s1 + $0x258] sm:$0xf]
    %v207 = vld [vmem:[%s1 + $0x25c] sm:$0xf]
    %v208 = vld [vmem:[%s1 + $0x260] sm:$0xf]
    %v209 = vld [vmem:[%s1 + $0x264] sm:$0xf]
    %v210 = vld [vmem:[%s1 + $0x268] sm:$0xf]
    %v211 = vld [vmem:[%s1 + $0x26c] sm:$0xf]
    %v212 = vld [vmem:[%s1 + $0x270] sm:$0xf]
    %v213 = vld [vmem:[%s1 + $0x274] sm:$0xf]
    %v214 = vld [vmem:[%s1 + $0x278] sm:$0xf]
    %v215 = vld [vmem:[%s1 + $0x27c] sm:$0xf]
    %v216 = vld [vmem:[%s1 + $0x280] sm:$0xf]
    %v217 = vld [vmem:[%s1 + $0x284] sm:$0xf]
    %v218 = vld [vmem:[%s1 + $0x288] sm:$0xf]
    %v219 = vld [vmem:[%s1 + $0x28c] sm:$0xf]
    %v220 = vld [vmem:[%s1 + $0x290] sm:$0xf]
    %v221 = vld [vmem:[%s1 + $0x294] sm:$0xf]
    %v222 = vld [vmem:[%s1 + $0x298] sm:$0xf]
    %v223 = vld [vmem:[%s1 + $0x29c] sm:$0xf]
    %v224 = vld [vmem:[%s1 + $0x2a0] sm:$0xf]
    %v225 = vld [vmem:[%s1 + $0x2a4] sm:$0xf]
    %v226 = vld [vmem:[%s1 + $0x2a8] sm:$0xf]
    %v227 = vld [vmem:[%s1 + $0x2ac] sm:$0xf]
    %v228 = vld [vmem:[%s1 + $0x2b0] sm:$0xf]
    %v229 = vld [vmem:[%s1 + $0x2b4] sm:$0xf]
    %v230 = vld [vmem:[%s1 + $0x2b8] sm:$0xf]
    %v231 = vld [vmem:[%s1 + $0x2bc] sm:$0xf]
    %v232 = vld [vmem:[%s1 + $0x2c0] sm:$0xf]
    %v233 = vld [vmem:[%s1 + $0x2c4] sm:$0xf]
    %v234 = vld [vmem:[%s1 + $0x2c8] sm:$0xf]
    %v235 = vld [vmem:[%s1 + $0x2cc] sm:$0xf]
    %v236 = vld [vmem:[%s1 + $0x2d0] sm:$0xf]
    %v237 = vld [vmem:[%s1 + $0x2d4] sm:$0xf]
    %v238 = vld [vmem:[%s1 + $0x2d8] sm:$0xf]
    %v239 = vld [vmem:[%s1 + $0x2dc] sm:$0xf]
    %v240 = vld [vmem:[%s1 + $0x2e0] sm:$0xf]
    %v241 = vld [vmem:[%s1 + $0x2e4] sm:$0xf]
    %v242 = vld [vmem:[%s1 + $0x2e8] sm:$0xf]
    %v243 = vld [vmem:[%s1 + $0x2ec] sm:$0xf]
    %v244 = vld [vmem:[%s1 + $0x2f0] sm:$0xf]
    %v245 = vld [vmem:[%s1 + $0x2f4] sm:$0xf]
    %v246 = vld [vmem:[%s1 + $0x2f8] sm:$0xf]
    %v247 = vld [vmem:[%s1 + $0x2fc] sm:$0xf]
    %v248 = vld [vmem:[%s1 + $0x300] sm:$0xf]
    %v249 = vld [vmem:[%s1 + $0x304] sm:$0xf]
    %v250 = vld [vmem:[%s1 + $0x308] sm:$0xf]
    %v251 = vld [vmem:[%s1 + $0x30c] sm:$0xf]
    %v252 = vld [vmem:[%s1 + $0x310] sm:$0xf]
    %v253 = vld [vmem:[%s1 + $0x314] sm:$0xf]
    %v254 = vld [vmem:[%s1 + $0x318] sm:$0xf]
    %v255 = vld [vmem:[%s1 + $0x31c] sm:$0xf]
    %v256 = vld [vmem:[%s1 + $0x320] sm:$0xf]
    %v257 = vld [vmem:[%s1 + $0x324] sm:$0xf]
    %v258 = vld [vmem:[%s1 + $0x328] sm:$0xf]
    %v259 = vld [vmem:[%s1 + $0x32c] sm:$0xf]
    %v260 = vld [vmem:[%s1 + $0x330] sm:$0xf]
    %v261 = vld [vmem:[%s1 + $0x334] sm:$0xf]
    %v262 = vld [vmem:[%s1 + $0x338] sm:$0xf]
    %v263 = vld [vmem:[%s1 + $0x33c] sm:$0xf]
    %v264 = vld [vmem:[%s1 + $0x340] sm:$0xf]
    %v265 = vld [vmem:[%s1 + $0x344] sm:$0xf]
    %v266 = vld [vmem:[%s1 + $0x348] sm:$0xf]
    %v267 = vld [vmem:[%s1 + $0x34c] sm:$0xf]
    %v268 = vld [vmem:[%s1 + $0x350] sm:$0xf]
    %v269 = vld [vmem:[%s1 + $0x354] sm:$0xf]
    %v270 = vld [vmem:[%s1 + $0x358] sm:$0xf]
    %v271 = vld [vmem:[%s1 + $0x35c] sm:$0xf]
    %v272 = vld [vmem:[%s1 + $0x360] sm:$0xf]
    %v273 = vld [vmem:[%s1 + $0x364] sm:$0xf]
    %v274 = vld [vmem:[%s1 + $0x368] sm:$0xf]
    %v275 = vld [vmem:[%s1 + $0x36c] sm:$0xf]
    %v276 = vld [vmem:[%s1 + $0x370] sm:$0xf]
    %v277 = vld [vmem:[%s1 + $0x374] sm:$0xf]
    %v278 = vld [vmem:[%s1 + $0x378] sm:$0xf]
    %v279 = vld [vmem:[%s1 + $0x37c] sm:$0xf]
    %v280 = vld [vmem:[%s1 + $0x380] sm:$0xf]
    %v281 = vld [vmem:[%s1 + $0x384] sm:$0xf]
    %v282 = vld [vmem:[%s1 + $0x388] sm:$0xf]
    %v283 = vld [vmem:[%s1 + $0x38c] sm:$0xf]
    %v284 = vld [vmem:[%s1 + $0x390] sm:$0xf]
    %v285 = vld [vmem:[%s1 + $0x394] sm:$0xf]
    %v286 = vld [vmem:[%s1 + $0x398] sm:$0xf]
    %v287 = vld [vmem:[%s1 + $0x39c] sm:$0xf]
    %v288 = vld [vmem:[%s1 + $0x3a0] sm:$0xf]
    %v289 = vld [vmem:[%s1 + $0x3a4] sm:$0xf]
    %v290 = vld [vmem:[%s1 + $0x3a8] sm:$0xf]
    %v291 = vld [vmem:[%s1 + $0x3ac] sm:$0xf]
    %v292 = vld [vmem:[%s1 + $0x3b0] sm:$0xf]
    %v293 = vld [vmem:[%s1 + $0x3b4] sm:$0xf]
    %v294 = vld [vmem:[%s1 + $0x3b8] sm:$0xf]
    %v295 = vld [vmem:[%s1 + $0x3bc] sm:$0xf]
    %v296 = vld [vmem:[%s1 + $0x3c0] sm:$0xf]
    %v297 = vld [vmem:[%s1 + $0x3c4] sm:$0xf]
    %v298 = vld [vmem:[%s1 + $0x3c8] sm:$0xf]
    %v299 = vld [vmem:[%s1 + $0x3cc] sm:$0xf]
    %v300 = vld [vmem:[%s1 + $0x3d0] sm:$0xf]
    %v301 = vld [vmem:[%s1 + $0x3d4] sm:$0xf]
    %v302 = vld [vmem:[%s1 + $0x3d8] sm:$0xf]
    %v303 = vld [vmem:[%s1 + $0x3dc] sm:$0xf]
    %v304 = vld [vmem:[%s1 + $0x3e0] sm:$0xf]
    %v305 = vld [vmem:[%s1 + $0x3e4] sm:$0xf]
    %v306 = vld [vmem:[%s1 + $0x3e8] sm:$0xf]
    %v307 = vld [vmem:[%s1 + $0x3ec] sm:$0xf]
    %v308 = vld [vmem:[%s1 + $0x3f0] sm:$0xf]
    %v309 = vld [vmem:[%s1 + $0x3f4] sm:$0xf]
    %v310 = vld [vmem:[%s1 + $0x3f8] sm:$0xf]
    %v311 = vld [vmem:[%s1 + $0x3fc] sm:$0xf]
    %v312 = vld [vmem:[%s2] sm:$0x1]
    %v314 = vlaneseq
    %v315 = vshrl.u32 %v314, 7
    %v316 = vsub.s32 0, %v315
    %v317 = vrot.slane %v312, %v316
    %v335 = vunpack.c.l.b16 %v40
    %v336 = vunpack.c.h.b16 %v40
    %v337 = vunpack.c.l.b16 %v41
    %v338 = vunpack.c.h.b16 %v41
    %v339 = vunpack.c.l.b16 %v42
    %v340 = vunpack.c.h.b16 %v42
    %v341 = vunpack.c.l.b16 %v43
    %v342 = vunpack.c.h.b16 %v43
    %v343 = vunpack.c.l.b16 %v44
    %v344 = vunpack.c.h.b16 %v44
    %v345 = vunpack.c.l.b16 %v45
    %v346 = vunpack.c.h.b16 %v45
    %v347 = vunpack.c.l.b16 %v46
    %v348 = vunpack.c.h.b16 %v46
    %v349 = vunpack.c.l.b16 %v47
    %v350 = vunpack.c.h.b16 %v47
    %v351 = vunpack.c.l.b16 %v48
    %v352 = vunpack.c.h.b16 %v48
    %v353 = vunpack.c.l.b16 %v49
    %v354 = vunpack.c.h.b16 %v49
    %v355 = vunpack.c.l.b16 %v50
    %v356 = vunpack.c.h.b16 %v50
    %v357 = vunpack.c.l.b16 %v51
    %v358 = vunpack.c.h.b16 %v51
    %v359 = vunpack.c.l.b16 %v52
    %v360 = vunpack.c.h.b16 %v52
    %v361 = vunpack.c.l.b16 %v53
    %v362 = vunpack.c.h.b16 %v53
    %v363 = vunpack.c.l.b16 %v54
    %v364 = vunpack.c.h.b16 %v54
    %v365 = vunpack.c.l.b16 %v55
    %v366 = vunpack.c.h.b16 %v55
    %v367 = vpack.c.b16 %v351, %v335
    %v368 = vpack.c.b16 %v352, %v336
    %v369 = vpack.c.b16 %v353, %v337
    %v370 = vpack.c.b16 %v354, %v338
    %v371 = vpack.c.b16 %v355, %v339
    %v372 = vpack.c.b16 %v356, %v340
    %v373 = vpack.c.b16 %v357, %v341
    %v374 = vpack.c.b16 %v358, %v342
    %v375 = vpack.c.b16 %v359, %v343
    %v376 = vpack.c.b16 %v360, %v344
    %v377 = vpack.c.b16 %v361, %v345
    %v378 = vpack.c.b16 %v362, %v346
    %v379 = vpack.c.b16 %v363, %v347
    %v380 = vpack.c.b16 %v364, %v348
    %v381 = vpack.c.b16 %v365, %v349
    %v382 = vpack.c.b16 %v366, %v350
    %v655 = vunpack.c.l.b16 %v56
    %v656 = vunpack.c.l.b16 %v57
    %v657 = vunpack.c.l.b16 %v58
    %v658 = vunpack.c.l.b16 %v59
    %v659 = vunpack.c.l.b16 %v60
    %v660 = vunpack.c.l.b16 %v61
    %v661 = vunpack.c.l.b16 %v62
    %v662 = vunpack.c.l.b16 %v63
    %v663 = vunpack.c.l.b16 %v64
    %v664 = vunpack.c.l.b16 %v65
    %v665 = vunpack.c.l.b16 %v66
    %v666 = vunpack.c.l.b16 %v67
    %v667 = vunpack.c.l.b16 %v68
    %v668 = vunpack.c.l.b16 %v69
    %v669 = vunpack.c.l.b16 %v70
    %v670 = vunpack.c.l.b16 %v71
    %v671 = vunpack.c.l.b16 %v72
    %v672 = vunpack.c.l.b16 %v73
    %v673 = vunpack.c.l.b16 %v74
    %v674 = vunpack.c.l.b16 %v75
    %v675 = vunpack.c.l.b16 %v76
    %v676 = vunpack.c.l.b16 %v77
    %v677 = vunpack.c.l.b16 %v78
    %v678 = vunpack.c.l.b16 %v79
    %v679 = vunpack.c.l.b16 %v80
    %v680 = vunpack.c.l.b16 %v81
    %v681 = vunpack.c.l.b16 %v82
    %v682 = vunpack.c.l.b16 %v83
    %v683 = vunpack.c.l.b16 %v84
    %v684 = vunpack.c.l.b16 %v85
    %v685 = vunpack.c.l.b16 %v86
    %v686 = vunpack.c.l.b16 %v87
    %v687 = vunpack.c.l.b16 %v88
    %v688 = vunpack.c.l.b16 %v89
    %v689 = vunpack.c.l.b16 %v90
    %v690 = vunpack.c.l.b16 %v91
    %v691 = vunpack.c.l.b16 %v92
    %v692 = vunpack.c.l.b16 %v93
    %v693 = vunpack.c.l.b16 %v94
    %v694 = vunpack.c.l.b16 %v95
    %v695 = vunpack.c.l.b16 %v96
    %v696 = vunpack.c.l.b16 %v97
    %v697 = vunpack.c.l.b16 %v98
    %v698 = vunpack.c.l.b16 %v99
    %v699 = vunpack.c.l.b16 %v100
    %v700 = vunpack.c.l.b16 %v101
    %v701 = vunpack.c.l.b16 %v102
    %v702 = vunpack.c.l.b16 %v103
    %v703 = vunpack.c.l.b16 %v104
    %v704 = vunpack.c.l.b16 %v105
    %v705 = vunpack.c.l.b16 %v106
    %v706 = vunpack.c.l.b16 %v107
    %v707 = vunpack.c.l.b16 %v108
    %v708 = vunpack.c.l.b16 %v109
    %v709 = vunpack.c.l.b16 %v110
    %v710 = vunpack.c.l.b16 %v111
    %v711 = vunpack.c.l.b16 %v112
    %v712 = vunpack.c.l.b16 %v113
    %v713 = vunpack.c.l.b16 %v114
    %v714 = vunpack.c.l.b16 %v115
    %v715 = vunpack.c.l.b16 %v116
    %v716 = vunpack.c.l.b16 %v117
    %v717 = vunpack.c.l.b16 %v118
    %v718 = vunpack.c.l.b16 %v119
    %v719 = vunpack.c.l.b16 %v120
    %v720 = vunpack.c.l.b16 %v121
    %v721 = vunpack.c.l.b16 %v122
    %v722 = vunpack.c.l.b16 %v123
    %v723 = vunpack.c.l.b16 %v124
    %v724 = vunpack.c.l.b16 %v125
    %v725 = vunpack.c.l.b16 %v126
    %v726 = vunpack.c.l.b16 %v127
    %v727 = vunpack.c.l.b16 %v128
    %v728 = vunpack.c.l.b16 %v129
    %v729 = vunpack.c.l.b16 %v130
    %v730 = vunpack.c.l.b16 %v131
    %v731 = vunpack.c.l.b16 %v132
    %v732 = vunpack.c.l.b16 %v133
    %v733 = vunpack.c.l.b16 %v134
    %v734 = vunpack.c.l.b16 %v135
    %v735 = vunpack.c.l.b16 %v136
    %v736 = vunpack.c.l.b16 %v137
    %v737 = vunpack.c.l.b16 %v138
    %v738 = vunpack.c.l.b16 %v139
    %v739 = vunpack.c.l.b16 %v140
    %v740 = vunpack.c.l.b16 %v141
    %v741 = vunpack.c.l.b16 %v142
    %v742 = vunpack.c.l.b16 %v143
    %v743 = vunpack.c.l.b16 %v144
    %v744 = vunpack.c.l.b16 %v145
    %v745 = vunpack.c.l.b16 %v146
    %v746 = vunpack.c.l.b16 %v147
    %v747 = vunpack.c.l.b16 %v148
    %v748 = vunpack.c.l.b16 %v149
    %v749 = vunpack.c.l.b16 %v150
    %v750 = vunpack.c.l.b16 %v151
    %v751 = vunpack.c.l.b16 %v152
    %v752 = vunpack.c.l.b16 %v153
    %v753 = vunpack.c.l.b16 %v154
    %v754 = vunpack.c.l.b16 %v155
    %v755 = vunpack.c.l.b16 %v156
    %v756 = vunpack.c.l.b16 %v157
    %v757 = vunpack.c.l.b16 %v158
    %v758 = vunpack.c.l.b16 %v159
    %v759 = vunpack.c.l.b16 %v160
    %v760 = vunpack.c.l.b16 %v161
    %v761 = vunpack.c.l.b16 %v162
    %v762 = vunpack.c.l.b16 %v163
    %v763 = vunpack.c.l.b16 %v164
    %v764 = vunpack.c.l.b16 %v165
    %v765 = vunpack.c.l.b16 %v166
    %v766 = vunpack.c.l.b16 %v167
    %v767 = vunpack.c.l.b16 %v168
    %v768 = vunpack.c.l.b16 %v169
    %v769 = vunpack.c.l.b16 %v170
    %v770 = vunpack.c.l.b16 %v171
    %v771 = vunpack.c.l.b16 %v172
    %v772 = vunpack.c.l.b16 %v173
    %v773 = vunpack.c.l.b16 %v174
    %v774 = vunpack.c.l.b16 %v175
    %v775 = vunpack.c.l.b16 %v176
    %v776 = vunpack.c.l.b16 %v177
    %v777 = vunpack.c.l.b16 %v178
    %v778 = vunpack.c.l.b16 %v179
    %v779 = vunpack.c.l.b16 %v180
    %v780 = vunpack.c.l.b16 %v181
    %v781 = vunpack.c.l.b16 %v182
    %v782 = vunpack.c.l.b16 %v183
    %v783 = vunpack.c.l.b16 %v184
    %v784 = vunpack.c.l.b16 %v185
    %v785 = vunpack.c.l.b16 %v186
    %v786 = vunpack.c.l.b16 %v187
    %v787 = vunpack.c.l.b16 %v188
    %v788 = vunpack.c.l.b16 %v189
    %v789 = vunpack.c.l.b16 %v190
    %v790 = vunpack.c.l.b16 %v191
    %v791 = vunpack.c.l.b16 %v192
    %v792 = vunpack.c.l.b16 %v193
    %v793 = vunpack.c.l.b16 %v194
    %v794 = vunpack.c.l.b16 %v195
    %v795 = vunpack.c.l.b16 %v196
    %v796 = vunpack.c.l.b16 %v197
    %v797 = vunpack.c.l.b16 %v198
    %v798 = vunpack.c.l.b16 %v199
    %v799 = vunpack.c.l.b16 %v200
    %v800 = vunpack.c.l.b16 %v201
    %v801 = vunpack.c.l.b16 %v202
    %v802 = vunpack.c.l.b16 %v203
    %v803 = vunpack.c.l.b16 %v204
    %v804 = vunpack.c.l.b16 %v205
    %v805 = vunpack.c.l.b16 %v206
    %v806 = vunpack.c.l.b16 %v207
    %v807 = vunpack.c.l.b16 %v208
    %v808 = vunpack.c.l.b16 %v209
    %v809 = vunpack.c.l.b16 %v210
    %v810 = vunpack.c.l.b16 %v211
    %v811 = vunpack.c.l.b16 %v212
    %v812 = vunpack.c.l.b16 %v213
    %v813 = vunpack.c.l.b16 %v214
    %v814 = vunpack.c.l.b16 %v215
    %v815 = vunpack.c.l.b16 %v216
    %v816 = vunpack.c.l.b16 %v217
    %v817 = vunpack.c.l.b16 %v218
    %v818 = vunpack.c.l.b16 %v219
    %v819 = vunpack.c.l.b16 %v220
    %v820 = vunpack.c.l.b16 %v221
    %v821 = vunpack.c.l.b16 %v222
    %v822 = vunpack.c.l.b16 %v223
    %v823 = vunpack.c.l.b16 %v224
    %v824 = vunpack.c.l.b16 %v225
    %v825 = vunpack.c.l.b16 %v226
    %v826 = vunpack.c.l.b16 %v227
    %v827 = vunpack.c.l.b16 %v228
    %v828 = vunpack.c.l.b16 %v229
    %v829 = vunpack.c.l.b16 %v230
    %v830 = vunpack.c.l.b16 %v231
    %v831 = vunpack.c.l.b16 %v232
    %v832 = vunpack.c.l.b16 %v233
    %v833 = vunpack.c.l.b16 %v234
    %v834 = vunpack.c.l.b16 %v235
    %v835 = vunpack.c.l.b16 %v236
    %v836 = vunpack.c.l.b16 %v237
    %v837 = vunpack.c.l.b16 %v238
    %v838 = vunpack.c.l.b16 %v239
    %v839 = vunpack.c.l.b16 %v240
    %v840 = vunpack.c.l.b16 %v241
    %v841 = vunpack.c.l.b16 %v242
    %v842 = vunpack.c.l.b16 %v243
    %v843 = vunpack.c.l.b16 %v244
    %v844 = vunpack.c.l.b16 %v245
    %v845 = vunpack.c.l.b16 %v246
    %v846 = vunpack.c.l.b16 %v247
    %v847 = vunpack.c.l.b16 %v248
    %v848 = vunpack.c.l.b16 %v249
    %v849 = vunpack.c.l.b16 %v250
    %v850 = vunpack.c.l.b16 %v251
    %v851 = vunpack.c.l.b16 %v252
    %v852 = vunpack.c.l.b16 %v253
    %v853 = vunpack.c.l.b16 %v254
    %v854 = vunpack.c.l.b16 %v255
    %v855 = vunpack.c.l.b16 %v256
    %v856 = vunpack.c.l.b16 %v257
    %v857 = vunpack.c.l.b16 %v258
    %v858 = vunpack.c.l.b16 %v259
    %v859 = vunpack.c.l.b16 %v260
    %v860 = vunpack.c.l.b16 %v261
    %v861 = vunpack.c.l.b16 %v262
    %v862 = vunpack.c.l.b16 %v263
    %v863 = vunpack.c.l.b16 %v264
    %v864 = vunpack.c.l.b16 %v265
    %v865 = vunpack.c.l.b16 %v266
    %v866 = vunpack.c.l.b16 %v267
    %v867 = vunpack.c.l.b16 %v268
    %v868 = vunpack.c.l.b16 %v269
    %v869 = vunpack.c.l.b16 %v270
    %v870 = vunpack.c.l.b16 %v271
    %v871 = vunpack.c.l.b16 %v272
    %v872 = vunpack.c.l.b16 %v273
    %v873 = vunpack.c.l.b16 %v274
    %v874 = vunpack.c.l.b16 %v275
    %v875 = vunpack.c.l.b16 %v276
    %v876 = vunpack.c.l.b16 %v277
    %v877 = vunpack.c.l.b16 %v278
    %v878 = vunpack.c.l.b16 %v279
    %v879 = vunpack.c.l.b16 %v280
    %v880 = vunpack.c.l.b16 %v281
    %v881 = vunpack.c.l.b16 %v282
    %v882 = vunpack.c.l.b16 %v283
    %v883 = vunpack.c.l.b16 %v284
    %v884 = vunpack.c.l.b16 %v285
    %v885 = vunpack.c.l.b16 %v286
    %v886 = vunpack.c.l.b16 %v287
    %v887 = vunpack.c.l.b16 %v288
    %v888 = vunpack.c.l.b16 %v289
    %v889 = vunpack.c.l.b16 %v290
    %v890 = vunpack.c.l.b16 %v291
    %v891 = vunpack.c.l.b16 %v292
    %v892 = vunpack.c.l.b16 %v293
    %v893 = vunpack.c.l.b16 %v294
    %v894 = vunpack.c.l.b16 %v295
    %v895 = vunpack.c.l.b16 %v296
    %v896 = vunpack.c.l.b16 %v297
    %v897 = vunpack.c.l.b16 %v298
    %v898 = vunpack.c.l.b16 %v299
    %v899 = vunpack.c.l.b16 %v300
    %v900 = vunpack.c.l.b16 %v301
    %v901 = vunpack.c.l.b16 %v302
    %v902 = vunpack.c.l.b16 %v303
    %v903 = vunpack.c.l.b16 %v304
    %v904 = vunpack.c.l.b16 %v305
    %v905 = vunpack.c.l.b16 %v306
    %v906 = vunpack.c.l.b16 %v307
    %v907 = vunpack.c.l.b16 %v308
    %v908 = vunpack.c.l.b16 %v309
    %v909 = vunpack.c.l.b16 %v310
    %v910 = vunpack.c.l.b16 %v311
    %v911 = vpack.c.b16 %v656, %v655
    %v912 = vpack.c.b16 %v658, %v657
    %v913 = vpack.c.b16 %v660, %v659
    %v914 = vpack.c.b16 %v662, %v661
    %v915 = vpack.c.b16 %v664, %v663
    %v916 = vpack.c.b16 %v666, %v665
    %v917 = vpack.c.b16 %v668, %v667
    %v918 = vpack.c.b16 %v670, %v669
    %v919 = vpack.c.b16 %v672, %v671
    %v920 = vpack.c.b16 %v674, %v673
    %v921 = vpack.c.b16 %v676, %v675
    %v922 = vpack.c.b16 %v678, %v677
    %v923 = vpack.c.b16 %v680, %v679
    %v924 = vpack.c.b16 %v682, %v681
    %v925 = vpack.c.b16 %v684, %v683
    %v926 = vpack.c.b16 %v686, %v685
    %v927 = vpack.c.b16 %v688, %v687
    %v928 = vpack.c.b16 %v690, %v689
    %v929 = vpack.c.b16 %v692, %v691
    %v930 = vpack.c.b16 %v694, %v693
    %v931 = vpack.c.b16 %v696, %v695
    %v932 = vpack.c.b16 %v698, %v697
    %v933 = vpack.c.b16 %v700, %v699
    %v934 = vpack.c.b16 %v702, %v701
    %v935 = vpack.c.b16 %v704, %v703
    %v936 = vpack.c.b16 %v706, %v705
    %v937 = vpack.c.b16 %v708, %v707
    %v938 = vpack.c.b16 %v710, %v709
    %v939 = vpack.c.b16 %v712, %v711
    %v940 = vpack.c.b16 %v714, %v713
    %v941 = vpack.c.b16 %v716, %v715
    %v942 = vpack.c.b16 %v718, %v717
    %v943 = vpack.c.b16 %v720, %v719
    %v944 = vpack.c.b16 %v722, %v721
    %v945 = vpack.c.b16 %v724, %v723
    %v946 = vpack.c.b16 %v726, %v725
    %v947 = vpack.c.b16 %v728, %v727
    %v948 = vpack.c.b16 %v730, %v729
    %v949 = vpack.c.b16 %v732, %v731
    %v950 = vpack.c.b16 %v734, %v733
    %v951 = vpack.c.b16 %v736, %v735
    %v952 = vpack.c.b16 %v738, %v737
    %v953 = vpack.c.b16 %v740, %v739
    %v954 = vpack.c.b16 %v742, %v741
    %v955 = vpack.c.b16 %v744, %v743
    %v956 = vpack.c.b16 %v746, %v745
    %v957 = vpack.c.b16 %v748, %v747
    %v958 = vpack.c.b16 %v750, %v749
    %v959 = vpack.c.b16 %v752, %v751
    %v960 = vpack.c.b16 %v754, %v753
    %v961 = vpack.c.b16 %v756, %v755
    %v962 = vpack.c.b16 %v758, %v757
    %v963 = vpack.c.b16 %v760, %v759
    %v964 = vpack.c.b16 %v762, %v761
    %v965 = vpack.c.b16 %v764, %v763
    %v966 = vpack.c.b16 %v766, %v765
    %v967 = vpack.c.b16 %v768, %v767
    %v968 = vpack.c.b16 %v770, %v769
    %v969 = vpack.c.b16 %v772, %v771
    %v970 = vpack.c.b16 %v774, %v773
    %v971 = vpack.c.b16 %v776, %v775
    %v972 = vpack.c.b16 %v778, %v777
    %v973 = vpack.c.b16 %v780, %v779
    %v974 = vpack.c.b16 %v782, %v781
    %v975 = vpack.c.b16 %v784, %v783
    %v976 = vpack.c.b16 %v786, %v785
    %v977 = vpack.c.b16 %v788, %v787
    %v978 = vpack.c.b16 %v790, %v789
    %v979 = vpack.c.b16 %v792, %v791
    %v980 = vpack.c.b16 %v794, %v793
    %v981 = vpack.c.b16 %v796, %v795
    %v982 = vpack.c.b16 %v798, %v797
    %v983 = vpack.c.b16 %v800, %v799
    %v984 = vpack.c.b16 %v802, %v801
    %v985 = vpack.c.b16 %v804, %v803
    %v986 = vpack.c.b16 %v806, %v805
    %v987 = vpack.c.b16 %v808, %v807
    %v988 = vpack.c.b16 %v810, %v809
    %v989 = vpack.c.b16 %v812, %v811
    %v990 = vpack.c.b16 %v814, %v813
    %v991 = vpack.c.b16 %v816, %v815
    %v992 = vpack.c.b16 %v818, %v817
    %v993 = vpack.c.b16 %v820, %v819
    %v994 = vpack.c.b16 %v822, %v821
    %v995 = vpack.c.b16 %v824, %v823
    %v996 = vpack.c.b16 %v826, %v825
    %v997 = vpack.c.b16 %v828, %v827
    %v998 = vpack.c.b16 %v830, %v829
    %v999 = vpack.c.b16 %v832, %v831
    %v1000 = vpack.c.b16 %v834, %v833
    %v1001 = vpack.c.b16 %v836, %v835
    %v1002 = vpack.c.b16 %v838, %v837
    %v1003 = vpack.c.b16 %v840, %v839
    %v1004 = vpack.c.b16 %v842, %v841
    %v1005 = vpack.c.b16 %v844, %v843
    %v1006 = vpack.c.b16 %v846, %v845
    %v1007 = vpack.c.b16 %v848, %v847
    %v1008 = vpack.c.b16 %v850, %v849
    %v1009 = vpack.c.b16 %v852, %v851
    %v1010 = vpack.c.b16 %v854, %v853
    %v1011 = vpack.c.b16 %v856, %v855
    %v1012 = vpack.c.b16 %v858, %v857
    %v1013 = vpack.c.b16 %v860, %v859
    %v1014 = vpack.c.b16 %v862, %v861
    %v1015 = vpack.c.b16 %v864, %v863
    %v1016 = vpack.c.b16 %v866, %v865
    %v1017 = vpack.c.b16 %v868, %v867
    %v1018 = vpack.c.b16 %v870, %v869
    %v1019 = vpack.c.b16 %v872, %v871
    %v1020 = vpack.c.b16 %v874, %v873
    %v1021 = vpack.c.b16 %v876, %v875
    %v1022 = vpack.c.b16 %v878, %v877
    %v1023 = vpack.c.b16 %v880, %v879
    %v1024 = vpack.c.b16 %v882, %v881
    %v1025 = vpack.c.b16 %v884, %v883
    %v1026 = vpack.c.b16 %v886, %v885
    %v1027 = vpack.c.b16 %v888, %v887
    %v1028 = vpack.c.b16 %v890, %v889
    %v1029 = vpack.c.b16 %v892, %v891
    %v1030 = vpack.c.b16 %v894, %v893
    %v1031 = vpack.c.b16 %v896, %v895
    %v1032 = vpack.c.b16 %v898, %v897
    %v1033 = vpack.c.b16 %v900, %v899
    %v1034 = vpack.c.b16 %v902, %v901
    %v1035 = vpack.c.b16 %v904, %v903
    %v1036 = vpack.c.b16 %v906, %v905
    %v1037 = vpack.c.b16 %v908, %v907
    %v1038 = vpack.c.b16 %v910, %v909
    %1167 = vmatprep.subr.bf16.mxu0 0
    %1168 = vmatpush1.bf16.msra.mxu0 %v918
    %1169 = vmatprep.subr.bf16.mxu0 0
    %1170 = vmatpush1.bf16.msra.mxu0 %v917
    %1171 = vmatprep.subr.bf16.mxu0 0
    %1172 = vmatpush1.bf16.msra.mxu0 %v916
    %1173 = vmatprep.subr.bf16.mxu0 0
    %1174 = vmatpush1.bf16.msra.mxu0 %v915
    %1175 = vmatprep.subr.bf16.mxu0 0
    %1176 = vmatpush1.bf16.msra.mxu0 %v914
    %1177 = vmatprep.subr.bf16.mxu0 0
    %1178 = vmatpush1.bf16.msra.mxu0 %v913
    %1179 = vmatprep.subr.bf16.mxu0 0
    %1180 = vmatpush1.bf16.msra.mxu0 %v912
    %1181 = vmatprep.subr.bf16.mxu0 0
    %1182 = vmatpush1.bf16.msra.mxu0 %v911
    %1183 = vmatprep.subr.bf16.mxu0 0
    %1184 = vmatpush2.bf16.msra.mxu0 %v926
    %1185 = vmatprep.subr.bf16.mxu0 0
    %1186 = vmatpush2.bf16.msra.mxu0 %v925
    %1187 = vmatprep.subr.bf16.mxu0 0
    %1188 = vmatpush2.bf16.msra.mxu0 %v924
    %1189 = vmatprep.subr.bf16.mxu0 0
    %1190 = vmatpush2.bf16.msra.mxu0 %v923
    %1191 = vmatprep.subr.bf16.mxu0 0
    %1192 = vmatpush2.bf16.msra.mxu0 %v922
    %1193 = vmatprep.subr.bf16.mxu0 0
    %1194 = vmatpush2.bf16.msra.mxu0 %v921
    %1195 = vmatprep.subr.bf16.mxu0 0
    %1196 = vmatpush2.bf16.msra.mxu0 %v920
    %1197 = vmatprep.subr.bf16.mxu0 0
    %1198 = vmatpush2.bf16.msra.mxu0 %v919
    %1199 = vmatprep.mubr.bf16.mxu0 %v368
    %1200 = vmatmul.mubr.bf16.gmra.mxu0 %v367
    %v1201 = vpop.f32.mrf.mxu0
    %v1202 = vadd.f32 %v317, %v1201
    %v1203 = vpop.f32.mrf.mxu0
    %v1204 = vpop.f32.mrf.mxu0
    %v1205 = vadd.f32 %v317, %v1204
    %v1206 = vpop.f32.mrf.mxu0
    %1207 = vdwg.mxu0
    %1208 = vmatprep.subr.bf16.mxu0 0
    %1209 = vmatpush1.bf16.msra.mxu0 %v934
    %1210 = vmatprep.subr.bf16.mxu0 0
    %1211 = vmatpush1.bf16.msra.mxu0 %v933
    %1212 = vmatprep.subr.bf16.mxu0 0
    %1213 = vmatpush1.bf16.msra.mxu0 %v932
    %1214 = vmatprep.subr.bf16.mxu0 0
    %1215 = vmatpush1.bf16.msra.mxu0 %v931
    %1216 = vmatprep.subr.bf16.mxu0 0
    %1217 = vmatpush1.bf16.msra.mxu0 %v930
    %1218 = vmatprep.subr.bf16.mxu0 0
    %1219 = vmatpush1.bf16.msra.mxu0 %v929
    %1220 = vmatprep.subr.bf16.mxu0 0
    %1221 = vmatpush1.bf16.msra.mxu0 %v928
    %1222 = vmatprep.subr.bf16.mxu0 0
    %1223 = vmatpush1.bf16.msra.mxu0 %v927
    %1224 = vmatprep.subr.bf16.mxu0 0
    %1225 = vmatpush2.bf16.msra.mxu0 %v942
    %1226 = vmatprep.subr.bf16.mxu0 0
    %1227 = vmatpush2.bf16.msra.mxu0 %v941
    %1228 = vmatprep.subr.bf16.mxu0 0
    %1229 = vmatpush2.bf16.msra.mxu0 %v940
    %1230 = vmatprep.subr.bf16.mxu0 0
    %1231 = vmatpush2.bf16.msra.mxu0 %v939
    %1232 = vmatprep.subr.bf16.mxu0 0
    %1233 = vmatpush2.bf16.msra.mxu0 %v938
    %1234 = vmatprep.subr.bf16.mxu0 0
    %1235 = vmatpush2.bf16.msra.mxu0 %v937
    %1236 = vmatprep.subr.bf16.mxu0 0
    %1237 = vmatpush2.bf16.msra.mxu0 %v936
    %1238 = vmatprep.subr.bf16.mxu0 0
    %1239 = vmatpush2.bf16.msra.mxu0 %v935
    %1240 = vmatprep.mubr.bf16.mxu0 %v370
    %1241 = vmatmul.mubr.bf16.gmra.mxu0 %v369
    %v1242 = vpop.f32.mrf.mxu0
    %v1243 = vadd.f32 %v1202, %v1242
    %v1244 = vpop.f32.mrf.mxu0
    %v1245 = vpop.f32.mrf.mxu0
    %v1246 = vadd.f32 %v1205, %v1245
    %v1247 = vpop.f32.mrf.mxu0
    %1248 = vdwg.mxu0
    %1249 = vmatprep.subr.bf16.mxu0 0
    %1250 = vmatpush1.bf16.msra.mxu0 %v950
    %1251 = vmatprep.subr.bf16.mxu0 0
    %1252 = vmatpush1.bf16.msra.mxu0 %v949
    %1253 = vmatprep.subr.bf16.mxu0 0
    %1254 = vmatpush1.bf16.msra.mxu0 %v948
    %1255 = vmatprep.subr.bf16.mxu0 0
    %1256 = vmatpush1.bf16.msra.mxu0 %v947
    %1257 = vmatprep.subr.bf16.mxu0 0
    %1258 = vmatpush1.bf16.msra.mxu0 %v946
    %1259 = vmatprep.subr.bf16.mxu0 0
    %1260 = vmatpush1.bf16.msra.mxu0 %v945
    %1261 = vmatprep.subr.bf16.mxu0 0
    %1262 = vmatpush1.bf16.msra.mxu0 %v944
    %1263 = vmatprep.subr.bf16.mxu0 0
    %1264 = vmatpush1.bf16.msra.mxu0 %v943
    %1265 = vmatprep.subr.bf16.mxu0 0
    %1266 = vmatpush2.bf16.msra.mxu0 %v958
    %1267 = vmatprep.subr.bf16.mxu0 0
    %1268 = vmatpush2.bf16.msra.mxu0 %v957
    %1269 = vmatprep.subr.bf16.mxu0 0
    %1270 = vmatpush2.bf16.msra.mxu0 %v956
    %1271 = vmatprep.subr.bf16.mxu0 0
    %1272 = vmatpush2.bf16.msra.mxu0 %v955
    %1273 = vmatprep.subr.bf16.mxu0 0
    %1274 = vmatpush2.bf16.msra.mxu0 %v954
    %1275 = vmatprep.subr.bf16.mxu0 0
    %1276 = vmatpush2.bf16.msra.mxu0 %v953
    %1277 = vmatprep.subr.bf16.mxu0 0
    %1278 = vmatpush2.bf16.msra.mxu0 %v952
    %1279 = vmatprep.subr.bf16.mxu0 0
    %1280 = vmatpush2.bf16.msra.mxu0 %v951
    %1281 = vmatprep.mubr.bf16.mxu0 %v372
    %1282 = vmatmul.mubr.bf16.gmra.mxu0 %v371
    %v1283 = vpop.f32.mrf.mxu0
    %v1284 = vadd.f32 %v1243, %v1283
    %v1285 = vpop.f32.mrf.mxu0
    %v1286 = vpop.f32.mrf.mxu0
    %v1287 = vadd.f32 %v1246, %v1286
    %v1288 = vpop.f32.mrf.mxu0
    %1289 = vdwg.mxu0
    %1290 = vmatprep.subr.bf16.mxu0 0
    %1291 = vmatpush1.bf16.msra.mxu0 %v966
    %1292 = vmatprep.subr.bf16.mxu0 0
    %1293 = vmatpush1.bf16.msra.mxu0 %v965
    %1294 = vmatprep.subr.bf16.mxu0 0
    %1295 = vmatpush1.bf16.msra.mxu0 %v964
    %1296 = vmatprep.subr.bf16.mxu0 0
    %1297 = vmatpush1.bf16.msra.mxu0 %v963
    %1298 = vmatprep.subr.bf16.mxu0 0
    %1299 = vmatpush1.bf16.msra.mxu0 %v962
    %1300 = vmatprep.subr.bf16.mxu0 0
    %1301 = vmatpush1.bf16.msra.mxu0 %v961
    %1302 = vmatprep.subr.bf16.mxu0 0
    %1303 = vmatpush1.bf16.msra.mxu0 %v960
    %1304 = vmatprep.subr.bf16.mxu0 0
    %1305 = vmatpush1.bf16.msra.mxu0 %v959
    %1306 = vmatprep.subr.bf16.mxu0 0
    %1307 = vmatpush2.bf16.msra.mxu0 %v974
    %1308 = vmatprep.subr.bf16.mxu0 0
    %1309 = vmatpush2.bf16.msra.mxu0 %v973
    %1310 = vmatprep.subr.bf16.mxu0 0
    %1311 = vmatpush2.bf16.msra.mxu0 %v972
    %1312 = vmatprep.subr.bf16.mxu0 0
    %1313 = vmatpush2.bf16.msra.mxu0 %v971
    %1314 = vmatprep.subr.bf16.mxu0 0
    %1315 = vmatpush2.bf16.msra.mxu0 %v970
    %1316 = vmatprep.subr.bf16.mxu0 0
    %1317 = vmatpush2.bf16.msra.mxu0 %v969
    %1318 = vmatprep.subr.bf16.mxu0 0
    %1319 = vmatpush2.bf16.msra.mxu0 %v968
    %1320 = vmatprep.subr.bf16.mxu0 0
    %1321 = vmatpush2.bf16.msra.mxu0 %v967
    %1322 = vmatprep.mubr.bf16.mxu0 %v374
    %1323 = vmatmul.mubr.bf16.gmra.mxu0 %v373
    %v1324 = vpop.f32.mrf.mxu0
    %v1325 = vadd.f32 %v1284, %v1324
    %v1326 = vpop.f32.mrf.mxu0
    %v1327 = vpop.f32.mrf.mxu0
    %v1328 = vadd.f32 %v1287, %v1327
    %v1329 = vpop.f32.mrf.mxu0
    %1330 = vdwg.mxu0
    %1331 = vmatprep.subr.bf16.mxu0 0
    %1332 = vmatpush1.bf16.msra.mxu0 %v982
    %1333 = vmatprep.subr.bf16.mxu0 0
    %1334 = vmatpush1.bf16.msra.mxu0 %v981
    %1335 = vmatprep.subr.bf16.mxu0 0
    %1336 = vmatpush1.bf16.msra.mxu0 %v980
    %1337 = vmatprep.subr.bf16.mxu0 0
    %1338 = vmatpush1.bf16.msra.mxu0 %v979
    %1339 = vmatprep.subr.bf16.mxu0 0
    %1340 = vmatpush1.bf16.msra.mxu0 %v978
    %1341 = vmatprep.subr.bf16.mxu0 0
    %1342 = vmatpush1.bf16.msra.mxu0 %v977
    %1343 = vmatprep.subr.bf16.mxu0 0
    %1344 = vmatpush1.bf16.msra.mxu0 %v976
    %1345 = vmatprep.subr.bf16.mxu0 0
    %1346 = vmatpush1.bf16.msra.mxu0 %v975
    %1347 = vmatprep.subr.bf16.mxu0 0
    %1348 = vmatpush2.bf16.msra.mxu0 %v990
    %1349 = vmatprep.subr.bf16.mxu0 0
    %1350 = vmatpush2.bf16.msra.mxu0 %v989
    %1351 = vmatprep.subr.bf16.mxu0 0
    %1352 = vmatpush2.bf16.msra.mxu0 %v988
    %1353 = vmatprep.subr.bf16.mxu0 0
    %1354 = vmatpush2.bf16.msra.mxu0 %v987
    %1355 = vmatprep.subr.bf16.mxu0 0
    %1356 = vmatpush2.bf16.msra.mxu0 %v986
    %1357 = vmatprep.subr.bf16.mxu0 0
    %1358 = vmatpush2.bf16.msra.mxu0 %v985
    %1359 = vmatprep.subr.bf16.mxu0 0
    %1360 = vmatpush2.bf16.msra.mxu0 %v984
    %1361 = vmatprep.subr.bf16.mxu0 0
    %1362 = vmatpush2.bf16.msra.mxu0 %v983
    %1363 = vmatprep.mubr.bf16.mxu0 %v376
    %1364 = vmatmul.mubr.bf16.gmra.mxu0 %v375
    %v1365 = vpop.f32.mrf.mxu0
    %v1366 = vadd.f32 %v1325, %v1365
    %v1367 = vpop.f32.mrf.mxu0
    %v1368 = vpop.f32.mrf.mxu0
    %v1369 = vadd.f32 %v1328, %v1368
    %v1370 = vpop.f32.mrf.mxu0
    %1371 = vdwg.mxu0
    %1372 = vmatprep.subr.bf16.mxu0 0
    %1373 = vmatpush1.bf16.msra.mxu0 %v998
    %1374 = vmatprep.subr.bf16.mxu0 0
    %1375 = vmatpush1.bf16.msra.mxu0 %v997
    %1376 = vmatprep.subr.bf16.mxu0 0
    %1377 = vmatpush1.bf16.msra.mxu0 %v996
    %1378 = vmatprep.subr.bf16.mxu0 0
    %1379 = vmatpush1.bf16.msra.mxu0 %v995
    %1380 = vmatprep.subr.bf16.mxu0 0
    %1381 = vmatpush1.bf16.msra.mxu0 %v994
    %1382 = vmatprep.subr.bf16.mxu0 0
    %1383 = vmatpush1.bf16.msra.mxu0 %v993
    %1384 = vmatprep.subr.bf16.mxu0 0
    %1385 = vmatpush1.bf16.msra.mxu0 %v992
    %1386 = vmatprep.subr.bf16.mxu0 0
    %1387 = vmatpush1.bf16.msra.mxu0 %v991
    %1388 = vmatprep.subr.bf16.mxu0 0
    %1389 = vmatpush2.bf16.msra.mxu0 %v1006
    %1390 = vmatprep.subr.bf16.mxu0 0
    %1391 = vmatpush2.bf16.msra.mxu0 %v1005
    %1392 = vmatprep.subr.bf16.mxu0 0
    %1393 = vmatpush2.bf16.msra.mxu0 %v1004
    %1394 = vmatprep.subr.bf16.mxu0 0
    %1395 = vmatpush2.bf16.msra.mxu0 %v1003
    %1396 = vmatprep.subr.bf16.mxu0 0
    %1397 = vmatpush2.bf16.msra.mxu0 %v1002
    %1398 = vmatprep.subr.bf16.mxu0 0
    %1399 = vmatpush2.bf16.msra.mxu0 %v1001
    %1400 = vmatprep.subr.bf16.mxu0 0
    %1401 = vmatpush2.bf16.msra.mxu0 %v1000
    %1402 = vmatprep.subr.bf16.mxu0 0
    %1403 = vmatpush2.bf16.msra.mxu0 %v999
    %1404 = vmatprep.mubr.bf16.mxu0 %v378
    %1405 = vmatmul.mubr.bf16.gmra.mxu0 %v377
    %v1406 = vpop.f32.mrf.mxu0
    %v1407 = vadd.f32 %v1366, %v1406
    %v1408 = vpop.f32.mrf.mxu0
    %v1409 = vpop.f32.mrf.mxu0
    %v1410 = vadd.f32 %v1369, %v1409
    %v1411 = vpop.f32.mrf.mxu0
    %1412 = vdwg.mxu0
    %1413 = vmatprep.subr.bf16.mxu0 0
    %1414 = vmatpush1.bf16.msra.mxu0 %v1014
    %1415 = vmatprep.subr.bf16.mxu0 0
    %1416 = vmatpush1.bf16.msra.mxu0 %v1013
    %1417 = vmatprep.subr.bf16.mxu0 0
    %1418 = vmatpush1.bf16.msra.mxu0 %v1012
    %1419 = vmatprep.subr.bf16.mxu0 0
    %1420 = vmatpush1.bf16.msra.mxu0 %v1011
    %1421 = vmatprep.subr.bf16.mxu0 0
    %1422 = vmatpush1.bf16.msra.mxu0 %v1010
    %1423 = vmatprep.subr.bf16.mxu0 0
    %1424 = vmatpush1.bf16.msra.mxu0 %v1009
    %1425 = vmatprep.subr.bf16.mxu0 0
    %1426 = vmatpush1.bf16.msra.mxu0 %v1008
    %1427 = vmatprep.subr.bf16.mxu0 0
    %1428 = vmatpush1.bf16.msra.mxu0 %v1007
    %1429 = vmatprep.subr.bf16.mxu0 0
    %1430 = vmatpush2.bf16.msra.mxu0 %v1022
    %1431 = vmatprep.subr.bf16.mxu0 0
    %1432 = vmatpush2.bf16.msra.mxu0 %v1021
    %1433 = vmatprep.subr.bf16.mxu0 0
    %1434 = vmatpush2.bf16.msra.mxu0 %v1020
    %1435 = vmatprep.subr.bf16.mxu0 0
    %1436 = vmatpush2.bf16.msra.mxu0 %v1019
    %1437 = vmatprep.subr.bf16.mxu0 0
    %1438 = vmatpush2.bf16.msra.mxu0 %v1018
    %1439 = vmatprep.subr.bf16.mxu0 0
    %1440 = vmatpush2.bf16.msra.mxu0 %v1017
    %1441 = vmatprep.subr.bf16.mxu0 0
    %1442 = vmatpush2.bf16.msra.mxu0 %v1016
    %1443 = vmatprep.subr.bf16.mxu0 0
    %1444 = vmatpush2.bf16.msra.mxu0 %v1015
    %1445 = vmatprep.mubr.bf16.mxu0 %v380
    %1446 = vmatmul.mubr.bf16.gmra.mxu0 %v379
    %v1447 = vpop.f32.mrf.mxu0
    %v1448 = vadd.f32 %v1407, %v1447
    %v1449 = vpop.f32.mrf.mxu0
    %v1450 = vpop.f32.mrf.mxu0
    %v1451 = vadd.f32 %v1410, %v1450
    %v1452 = vpop.f32.mrf.mxu0
    %1453 = vdwg.mxu0
    %1454 = vmatprep.subr.bf16.mxu0 0
    %1455 = vmatpush1.bf16.msra.mxu0 %v1030
    %1456 = vmatprep.subr.bf16.mxu0 0
    %1457 = vmatpush1.bf16.msra.mxu0 %v1029
    %1458 = vmatprep.subr.bf16.mxu0 0
    %1459 = vmatpush1.bf16.msra.mxu0 %v1028
    %1460 = vmatprep.subr.bf16.mxu0 0
    %1461 = vmatpush1.bf16.msra.mxu0 %v1027
    %1462 = vmatprep.subr.bf16.mxu0 0
    %1463 = vmatpush1.bf16.msra.mxu0 %v1026
    %1464 = vmatprep.subr.bf16.mxu0 0
    %1465 = vmatpush1.bf16.msra.mxu0 %v1025
    %1466 = vmatprep.subr.bf16.mxu0 0
    %1467 = vmatpush1.bf16.msra.mxu0 %v1024
    %1468 = vmatprep.subr.bf16.mxu0 0
    %1469 = vmatpush1.bf16.msra.mxu0 %v1023
    %1470 = vmatprep.subr.bf16.mxu0 0
    %1471 = vmatpush2.bf16.msra.mxu0 %v1038
    %1472 = vmatprep.subr.bf16.mxu0 0
    %1473 = vmatpush2.bf16.msra.mxu0 %v1037
    %1474 = vmatprep.subr.bf16.mxu0 0
    %1475 = vmatpush2.bf16.msra.mxu0 %v1036
    %1476 = vmatprep.subr.bf16.mxu0 0
    %1477 = vmatpush2.bf16.msra.mxu0 %v1035
    %1478 = vmatprep.subr.bf16.mxu0 0
    %1479 = vmatpush2.bf16.msra.mxu0 %v1034
    %1480 = vmatprep.subr.bf16.mxu0 0
    %1481 = vmatpush2.bf16.msra.mxu0 %v1033
    %1482 = vmatprep.subr.bf16.mxu0 0
    %1483 = vmatpush2.bf16.msra.mxu0 %v1032
    %1484 = vmatprep.subr.bf16.mxu0 0
    %1485 = vmatpush2.bf16.msra.mxu0 %v1031
    %1486 = vmatprep.mubr.bf16.mxu0 %v382
    %1487 = vmatmul.mubr.bf16.gmra.mxu0 %v381
    %v1488 = vpop.f32.mrf.mxu0
    %v1489 = vadd.f32 %v1448, %v1488
    %v1490 = vpop.f32.mrf.mxu0
    %v1491 = vpop.f32.mrf.mxu0
    %v1492 = vadd.f32 %v1451, %v1491
    %v1493 = vpop.f32.mrf.mxu0
    %1494 = vdwg.mxu0
    %v1495 = vmax.f32 %v1489, 0.0
    %v1496 = vmax.f32 %v1492, 0.0
    %v1497 = vpack.c.bf16 %v1496, %v1495
    %v1499 = vunpack.c.l.b16 %v1497
    %v1500 = vunpack.c.h.b16 %v1497
    %v1501 = vpack.c.b16 %v1499, %v1499
    %v1502 = vpack.c.b16 %v1500, %v1500
    %v1503 = vunpack.c.l.b16 %v1501
    %v1504 = vunpack.c.l.b16 %v1502
    %v1505 = vrot.slane %v1504, 7
    %vm1506 = vcmask 1041409
    %v1507 = vsel %vm1506, %v1505, %v1503
    %v1508 = vpack.c.b16 %v1507, %v1507
    %v1509 = vrot.slane %v1503, 1
    %v1510 = vsel %vm1506, %v1504, %v1509
    %v1511 = vpack.c.b16 %v1510, %v1510
    %1512 = vrot.lane.b32.xlu0 %v1511, 32
    %v1513 = vpop.permute.xlu0 %1512
    %v1514 = vrot.slane %v1503, 2
    %v1515 = vrot.slane %v1504, 1
    %v1516 = vsel %vm1506, %v1515, %v1514
    %v1517 = vpack.c.b16 %v1516, %v1516
    %1518 = vrot.lane.b32.xlu0 %v1517, 64
    %v1519 = vpop.permute.xlu0 %1518
    %v1520 = vrot.slane %v1503, 3
    %v1521 = vrot.slane %v1504, 2
    %v1522 = vsel %vm1506, %v1521, %v1520
    %v1523 = vpack.c.b16 %v1522, %v1522
    %1524 = vrot.lane.b32.xlu0 %v1523, 96
    %v1525 = vpop.permute.xlu0 %1524
    %vm1526 = vcmask 261120
    %v1529 = vsel %vm1526, %v1508, %v1513
    %vm1530 = vcmask 523264
    %v1532 = vsel %vm1530, %v1529, %v1519
    %vm1533 = vcmask 785408
    %v1535 = vsel %vm1533, %v1532, %v1525
    %1537 = vrot.lane.b32.xlu0 %v1508, 112
    %v1538 = vpop.permute.xlu0 %1537
    %1539 = vrot.lane.b32.xlu0 %v1511, 16
    %v1540 = vpop.permute.xlu0 %1539
    %1541 = vrot.lane.b32.xlu0 %v1517, 48
    %v1542 = vpop.permute.xlu0 %1541
    %1543 = vrot.lane.b32.xlu0 %v1523, 80
    %v1544 = vpop.permute.xlu0 %1543
    %v1547 = vsel %vm1526, %v1538, %v1540
    %v1549 = vsel %vm1530, %v1547, %v1542
    %v1551 = vsel %vm1533, %v1549, %v1544
    %1553 = vrot.lane.b32.xlu0 %v1508, 96
    %v1554 = vpop.permute.xlu0 %1553
    %1555 = vrot.lane.b32.xlu0 %v1517, 32
    %v1556 = vpop.permute.xlu0 %1555
    %1557 = vrot.lane.b32.xlu0 %v1523, 64
    %v1558 = vpop.permute.xlu0 %1557
    %v1561 = vsel %vm1526, %v1554, %v1511
    %v1563 = vsel %vm1530, %v1561, %v1556
    %v1565 = vsel %vm1533, %v1563, %v1558
    %vm1567 = vcmask 1043459
    %v1568 = vsel %vm1567, %v1505, %v1503
    %v1569 = vpack.c.b16 %v1568, %v1568
    %v1570 = vsel %vm1567, %v1504, %v1509
    %v1571 = vpack.c.b16 %v1570, %v1570
    %1572 = vrot.lane.b32.xlu0 %v1571, 32
    %v1573 = vpop.permute.xlu0 %1572
    %v1574 = vsel %vm1567, %v1515, %v1514
    %v1575 = vpack.c.b16 %v1574, %v1574
    %1576 = vrot.lane.b32.xlu0 %v1575, 64
    %v1577 = vpop.permute.xlu0 %1576
    %v1578 = vsel %vm1567, %v1521, %v1520
    %v1579 = vpack.c.b16 %v1578, %v1578
    %1580 = vrot.lane.b32.xlu0 %v1579, 96
    %v1581 = vpop.permute.xlu0 %1580
    %v1584 = vsel %vm1526, %v1569, %v1573
    %v1586 = vsel %vm1530, %v1584, %v1577
    %v1588 = vsel %vm1533, %v1586, %v1581
    %1589 = vrot.lane.b32.xlu0 %v1569, 112
    %v1590 = vpop.permute.xlu0 %1589
    %1591 = vrot.lane.b32.xlu0 %v1571, 16
    %v1592 = vpop.permute.xlu0 %1591
    %1593 = vrot.lane.b32.xlu0 %v1575, 48
    %v1594 = vpop.permute.xlu0 %1593
    %1595 = vrot.lane.b32.xlu0 %v1579, 80
    %v1596 = vpop.permute.xlu0 %1595
    %v1599 = vsel %vm1526, %v1590, %v1592
    %v1601 = vsel %vm1530, %v1599, %v1594
    %v1603 = vsel %vm1533, %v1601, %v1596
    %1604 = vrot.lane.b32.xlu0 %v1569, 96
    %v1605 = vpop.permute.xlu0 %1604
    %1606 = vrot.lane.b32.xlu0 %v1575, 32
    %v1607 = vpop.permute.xlu0 %1606
    %1608 = vrot.lane.b32.xlu0 %v1579, 64
    %v1609 = vpop.permute.xlu0 %1608
    %v1612 = vsel %vm1526, %v1605, %v1571
    %v1614 = vsel %vm1530, %v1612, %v1607
    %v1616 = vsel %vm1533, %v1614, %v1609
    %vm1617 = vcmask 1045509
    %v1618 = vsel %vm1617, %v1505, %v1503
    %v1619 = vpack.c.b16 %v1618, %v1618
    %v1620 = vsel %vm1617, %v1504, %v1509
    %v1621 = vpack.c.b16 %v1620, %v1620
    %1622 = vrot.lane.b32.xlu0 %v1621, 32
    %v1623 = vpop.permute.xlu0 %1622
    %v1624 = vsel %vm1617, %v1515, %v1514
    %v1625 = vpack.c.b16 %v1624, %v1624
    %1626 = vrot.lane.b32.xlu0 %v1625, 64
    %v1627 = vpop.permute.xlu0 %1626
    %v1628 = vsel %vm1617, %v1521, %v1520
    %v1629 = vpack.c.b16 %v1628, %v1628
    %1630 = vrot.lane.b32.xlu0 %v1629, 96
    %v1631 = vpop.permute.xlu0 %1630
    %v1634 = vsel %vm1526, %v1619, %v1623
    %v1636 = vsel %vm1530, %v1634, %v1627
    %v1638 = vsel %vm1533, %v1636, %v1631
    %1639 = vrot.lane.b32.xlu0 %v1619, 112
    %v1640 = vpop.permute.xlu0 %1639
    %1641 = vrot.lane.b32.xlu0 %v1621, 16
    %v1642 = vpop.permute.xlu0 %1641
    %1643 = vrot.lane.b32.xlu0 %v1625, 48
    %v1644 = vpop.permute.xlu0 %1643
    %1645 = vrot.lane.b32.xlu0 %v1629, 80
    %v1646 = vpop.permute.xlu0 %1645
    %v1649 = vsel %vm1526, %v1640, %v1642
    %v1651 = vsel %vm1530, %v1649, %v1644
    %v1653 = vsel %vm1533, %v1651, %v1646
    %1654 = vrot.lane.b32.xlu0 %v1619, 96
    %v1655 = vpop.permute.xlu0 %1654
    %1656 = vrot.lane.b32.xlu0 %v1625, 32
    %v1657 = vpop.permute.xlu0 %1656
    %1658 = vrot.lane.b32.xlu0 %v1629, 64
    %v1659 = vpop.permute.xlu0 %1658
    %v1662 = vsel %vm1526, %v1655, %v1621
    %v1664 = vsel %vm1530, %v1662, %v1657
    %v1666 = vsel %vm1533, %v1664, %v1659
    %v1668 = vrot.slane %v1588, 1
    %v1671 = vrot.slane %v1603, 1
    %v1674 = vrot.slane %v1616, 1
    %v1677 = vrot.slane %v1638, 2
    %v1680 = vrot.slane %v1653, 2
    %v1683 = vrot.slane %v1666, 2
    %v1685 = vld [vmem:[%s3] sm:$0xff]
    %v1686 = vld [vmem:[%s3 + $0x8] sm:$0xff]
    %v1687 = vld [vmem:[%s3 + $0x10] sm:$0xff]
    %v1688 = vld [vmem:[%s3 + $0x18] sm:$0xff]
    %v1689 = vld [vmem:[%s3 + $0x20] sm:$0xff]
    %v1690 = vld [vmem:[%s3 + $0x28] sm:$0xff]
    %v1691 = vld [vmem:[%s3 + $0x30] sm:$0xff]
    %v1692 = vld [vmem:[%s3 + $0x38] sm:$0xff]
    %v1693 = vld [vmem:[%s3 + $0x40] sm:$0xff]
    %v1694 = vld [vmem:[%s3 + $0x48] sm:$0xff]
    %v1695 = vld [vmem:[%s3 + $0x50] sm:$0xff]
    %v1696 = vld [vmem:[%s3 + $0x58] sm:$0xff]
    %v1697 = vld [vmem:[%s3 + $0x60] sm:$0xff]
    %v1698 = vld [vmem:[%s3 + $0x68] sm:$0xff]
    %v1699 = vld [vmem:[%s3 + $0x70] sm:$0xff]
    %v1700 = vld [vmem:[%s3 + $0x78] sm:$0xff]
    %v1701 = vld [vmem:[%s3 + $0x80] sm:$0xff]
    %v1702 = vld [vmem:[%s3 + $0x88] sm:$0xff]
    %v1703 = vld [vmem:[%s3 + $0x90] sm:$0xff]
    %v1704 = vld [vmem:[%s3 + $0x98] sm:$0xff]
    %v1705 = vld [vmem:[%s3 + $0xa0] sm:$0xff]
    %v1706 = vld [vmem:[%s3 + $0xa8] sm:$0xff]
    %v1707 = vld [vmem:[%s3 + $0xb0] sm:$0xff]
    %v1708 = vld [vmem:[%s3 + $0xb8] sm:$0xff]
    %v1709 = vld [vmem:[%s3 + $0xc0] sm:$0xff]
    %v1710 = vld [vmem:[%s3 + $0xc8] sm:$0xff]
    %v1711 = vld [vmem:[%s3 + $0xd0] sm:$0xff]
    %v1712 = vld [vmem:[%s3 + $0xd8] sm:$0xff]
    %v1713 = vld [vmem:[%s3 + $0xe0] sm:$0xff]
    %v1714 = vld [vmem:[%s3 + $0xe8] sm:$0xff]
    %v1715 = vld [vmem:[%s3 + $0xf0] sm:$0xff]
    %v1716 = vld [vmem:[%s3 + $0xf8] sm:$0xff]
    %v1717 = vld [vmem:[%s3 + $0x100] sm:$0xff]
    %v1718 = vld [vmem:[%s3 + $0x108] sm:$0xff]
    %v1719 = vld [vmem:[%s3 + $0x110] sm:$0xff]
    %v1720 = vld [vmem:[%s3 + $0x118] sm:$0xff]
    %v1721 = vld [vmem:[%s3 + $0x120] sm:$0xff]
    %v1722 = vld [vmem:[%s3 + $0x128] sm:$0xff]
    %v1723 = vld [vmem:[%s3 + $0x130] sm:$0xff]
    %v1724 = vld [vmem:[%s3 + $0x138] sm:$0xff]
    %v1725 = vld [vmem:[%s3 + $0x140] sm:$0xff]
    %v1726 = vld [vmem:[%s3 + $0x148] sm:$0xff]
    %v1727 = vld [vmem:[%s3 + $0x150] sm:$0xff]
    %v1728 = vld [vmem:[%s3 + $0x158] sm:$0xff]
    %v1729 = vld [vmem:[%s3 + $0x160] sm:$0xff]
    %v1730 = vld [vmem:[%s3 + $0x168] sm:$0xff]
    %v1731 = vld [vmem:[%s3 + $0x170] sm:$0xff]
    %v1732 = vld [vmem:[%s3 + $0x178] sm:$0xff]
    %v1733 = vld [vmem:[%s3 + $0x180] sm:$0xff]
    %v1734 = vld [vmem:[%s3 + $0x188] sm:$0xff]
    %v1735 = vld [vmem:[%s3 + $0x190] sm:$0xff]
    %v1736 = vld [vmem:[%s3 + $0x198] sm:$0xff]
    %v1737 = vld [vmem:[%s3 + $0x1a0] sm:$0xff]
    %v1738 = vld [vmem:[%s3 + $0x1a8] sm:$0xff]
    %v1739 = vld [vmem:[%s3 + $0x1b0] sm:$0xff]
    %v1740 = vld [vmem:[%s3 + $0x1b8] sm:$0xff]
    %v1741 = vld [vmem:[%s3 + $0x1c0] sm:$0xff]
    %v1742 = vld [vmem:[%s3 + $0x1c8] sm:$0xff]
    %v1743 = vld [vmem:[%s3 + $0x1d0] sm:$0xff]
    %v1744 = vld [vmem:[%s3 + $0x1d8] sm:$0xff]
    %v1745 = vld [vmem:[%s3 + $0x1e0] sm:$0xff]
    %v1746 = vld [vmem:[%s3 + $0x1e8] sm:$0xff]
    %v1747 = vld [vmem:[%s3 + $0x1f0] sm:$0xff]
    %v1748 = vld [vmem:[%s3 + $0x1f8] sm:$0xff]
    %v1749 = vld [vmem:[%s3 + $0x200] sm:$0xff]
    %v1750 = vld [vmem:[%s3 + $0x208] sm:$0xff]
    %v1751 = vld [vmem:[%s3 + $0x210] sm:$0xff]
    %v1752 = vld [vmem:[%s3 + $0x218] sm:$0xff]
    %v1753 = vld [vmem:[%s3 + $0x220] sm:$0xff]
    %v1754 = vld [vmem:[%s3 + $0x228] sm:$0xff]
    %v1755 = vld [vmem:[%s3 + $0x230] sm:$0xff]
    %v1756 = vld [vmem:[%s3 + $0x238] sm:$0xff]
    %v1757 = vld [vmem:[%s3 + $0x240] sm:$0xff]
    %v1758 = vld [vmem:[%s3 + $0x248] sm:$0xff]
    %v1759 = vld [vmem:[%s3 + $0x250] sm:$0xff]
    %v1760 = vld [vmem:[%s3 + $0x258] sm:$0xff]
    %v1761 = vld [vmem:[%s3 + $0x260] sm:$0xff]
    %v1762 = vld [vmem:[%s3 + $0x268] sm:$0xff]
    %v1763 = vld [vmem:[%s3 + $0x270] sm:$0xff]
    %v1764 = vld [vmem:[%s3 + $0x278] sm:$0xff]
    %v1765 = vld [vmem:[%s3 + $0x280] sm:$0xff]
    %v1766 = vld [vmem:[%s3 + $0x288] sm:$0xff]
    %v1767 = vld [vmem:[%s3 + $0x290] sm:$0xff]
    %v1768 = vld [vmem:[%s3 + $0x298] sm:$0xff]
    %v1769 = vld [vmem:[%s3 + $0x2a0] sm:$0xff]
    %v1770 = vld [vmem:[%s3 + $0x2a8] sm:$0xff]
    %v1771 = vld [vmem:[%s3 + $0x2b0] sm:$0xff]
    %v1772 = vld [vmem:[%s3 + $0x2b8] sm:$0xff]
    %v1773 = vld [vmem:[%s3 + $0x2c0] sm:$0xff]
    %v1774 = vld [vmem:[%s3 + $0x2c8] sm:$0xff]
    %v1775 = vld [vmem:[%s3 + $0x2d0] sm:$0xff]
    %v1776 = vld [vmem:[%s3 + $0x2d8] sm:$0xff]
    %v1777 = vld [vmem:[%s3 + $0x2e0] sm:$0xff]
    %v1778 = vld [vmem:[%s3 + $0x2e8] sm:$0xff]
    %v1779 = vld [vmem:[%s3 + $0x2f0] sm:$0xff]
    %v1780 = vld [vmem:[%s3 + $0x2f8] sm:$0xff]
    %v1781 = vld [vmem:[%s3 + $0x300] sm:$0xff]
    %v1782 = vld [vmem:[%s3 + $0x308] sm:$0xff]
    %v1783 = vld [vmem:[%s3 + $0x310] sm:$0xff]
    %v1784 = vld [vmem:[%s3 + $0x318] sm:$0xff]
    %v1785 = vld [vmem:[%s3 + $0x320] sm:$0xff]
    %v1786 = vld [vmem:[%s3 + $0x328] sm:$0xff]
    %v1787 = vld [vmem:[%s3 + $0x330] sm:$0xff]
    %v1788 = vld [vmem:[%s3 + $0x338] sm:$0xff]
    %v1789 = vld [vmem:[%s3 + $0x340] sm:$0xff]
    %v1790 = vld [vmem:[%s3 + $0x348] sm:$0xff]
    %v1791 = vld [vmem:[%s3 + $0x350] sm:$0xff]
    %v1792 = vld [vmem:[%s3 + $0x358] sm:$0xff]
    %v1793 = vld [vmem:[%s3 + $0x360] sm:$0xff]
    %v1794 = vld [vmem:[%s3 + $0x368] sm:$0xff]
    %v1795 = vld [vmem:[%s3 + $0x370] sm:$0xff]
    %v1796 = vld [vmem:[%s3 + $0x378] sm:$0xff]
    %v1797 = vld [vmem:[%s3 + $0x380] sm:$0xff]
    %v1798 = vld [vmem:[%s3 + $0x388] sm:$0xff]
    %v1799 = vld [vmem:[%s3 + $0x390] sm:$0xff]
    %v1800 = vld [vmem:[%s3 + $0x398] sm:$0xff]
    %v1801 = vld [vmem:[%s3 + $0x3a0] sm:$0xff]
    %v1802 = vld [vmem:[%s3 + $0x3a8] sm:$0xff]
    %v1803 = vld [vmem:[%s3 + $0x3b0] sm:$0xff]
    %v1804 = vld [vmem:[%s3 + $0x3b8] sm:$0xff]
    %v1805 = vld [vmem:[%s3 + $0x3c0] sm:$0xff]
    %v1806 = vld [vmem:[%s3 + $0x3c8] sm:$0xff]
    %v1807 = vld [vmem:[%s3 + $0x3d0] sm:$0xff]
    %v1808 = vld [vmem:[%s3 + $0x3d8] sm:$0xff]
    %v1809 = vld [vmem:[%s3 + $0x3e0] sm:$0xff]
    %v1810 = vld [vmem:[%s3 + $0x3e8] sm:$0xff]
    %v1811 = vld [vmem:[%s3 + $0x3f0] sm:$0xff]
    %v1812 = vld [vmem:[%s3 + $0x3f8] sm:$0xff]
    %v1813 = vld [vmem:[%s3 + $0x400] sm:$0xff]
    %v1814 = vld [vmem:[%s3 + $0x408] sm:$0xff]
    %v1815 = vld [vmem:[%s3 + $0x410] sm:$0xff]
    %v1816 = vld [vmem:[%s3 + $0x418] sm:$0xff]
    %v1817 = vld [vmem:[%s3 + $0x420] sm:$0xff]
    %v1818 = vld [vmem:[%s3 + $0x428] sm:$0xff]
    %v1819 = vld [vmem:[%s3 + $0x430] sm:$0xff]
    %v1820 = vld [vmem:[%s3 + $0x438] sm:$0xff]
    %v1821 = vld [vmem:[%s3 + $0x440] sm:$0xff]
    %v1822 = vld [vmem:[%s3 + $0x448] sm:$0xff]
    %v1823 = vld [vmem:[%s3 + $0x450] sm:$0xff]
    %v1824 = vld [vmem:[%s3 + $0x458] sm:$0xff]
    %v1825 = vld [vmem:[%s3 + $0x460] sm:$0xff]
    %v1826 = vld [vmem:[%s3 + $0x468] sm:$0xff]
    %v1827 = vld [vmem:[%s3 + $0x470] sm:$0xff]
    %v1828 = vld [vmem:[%s3 + $0x478] sm:$0xff]
    %v1829 = vld [vmem:[%s4] sm:$0x3]
    %v1831 = vlaneseq
    %v1832 = vshrl.u32 %v1831, 7
    %v1833 = vsub.s32 0, %v1832
    %v1834 = vrot.slane %v1829, %v1833
    %v1835 = vlaneseq
    %v1836 = vshrl.u32 %v1835, 7
    %v1837 = vsub.s32 1, %v1836
    %v1838 = vrot.slane %v1829, %v1837
    %v1985 = vunpack.c.l.b16 %v1685
    %v1986 = vunpack.c.h.b16 %v1685
    %v1987 = vunpack.c.l.b16 %v1686
    %v1988 = vunpack.c.h.b16 %v1686
    %v1989 = vunpack.c.l.b16 %v1687
    %v1990 = vunpack.c.h.b16 %v1687
    %v1991 = vunpack.c.l.b16 %v1688
    %v1992 = vunpack.c.h.b16 %v1688
    %v1993 = vunpack.c.l.b16 %v1689
    %v1994 = vunpack.c.h.b16 %v1689
    %v1995 = vunpack.c.l.b16 %v1690
    %v1996 = vunpack.c.h.b16 %v1690
    %v1997 = vunpack.c.l.b16 %v1691
    %v1998 = vunpack.c.h.b16 %v1691
    %v1999 = vunpack.c.l.b16 %v1692
    %v2000 = vunpack.c.h.b16 %v1692
    %v2001 = vunpack.c.l.b16 %v1693
    %v2002 = vunpack.c.h.b16 %v1693
    %v2003 = vunpack.c.l.b16 %v1694
    %v2004 = vunpack.c.h.b16 %v1694
    %v2005 = vunpack.c.l.b16 %v1695
    %v2006 = vunpack.c.h.b16 %v1695
    %v2007 = vunpack.c.l.b16 %v1696
    %v2008 = vunpack.c.h.b16 %v1696
    %v2009 = vunpack.c.l.b16 %v1697
    %v2010 = vunpack.c.h.b16 %v1697
    %v2011 = vunpack.c.l.b16 %v1698
    %v2012 = vunpack.c.h.b16 %v1698
    %v2013 = vunpack.c.l.b16 %v1699
    %v2014 = vunpack.c.h.b16 %v1699
    %v2015 = vunpack.c.l.b16 %v1700
    %v2016 = vunpack.c.h.b16 %v1700
    %v2017 = vunpack.c.l.b16 %v1701
    %v2018 = vunpack.c.h.b16 %v1701
    %v2019 = vunpack.c.l.b16 %v1702
    %v2020 = vunpack.c.h.b16 %v1702
    %v2021 = vunpack.c.l.b16 %v1703
    %v2022 = vunpack.c.h.b16 %v1703
    %v2023 = vunpack.c.l.b16 %v1704
    %v2024 = vunpack.c.h.b16 %v1704
    %v2025 = vunpack.c.l.b16 %v1705
    %v2026 = vunpack.c.h.b16 %v1705
    %v2027 = vunpack.c.l.b16 %v1706
    %v2028 = vunpack.c.h.b16 %v1706
    %v2029 = vunpack.c.l.b16 %v1707
    %v2030 = vunpack.c.h.b16 %v1707
    %v2031 = vunpack.c.l.b16 %v1708
    %v2032 = vunpack.c.h.b16 %v1708
    %v2033 = vunpack.c.l.b16 %v1709
    %v2034 = vunpack.c.h.b16 %v1709
    %v2035 = vunpack.c.l.b16 %v1710
    %v2036 = vunpack.c.h.b16 %v1710
    %v2037 = vunpack.c.l.b16 %v1711
    %v2038 = vunpack.c.h.b16 %v1711
    %v2039 = vunpack.c.l.b16 %v1712
    %v2040 = vunpack.c.h.b16 %v1712
    %v2041 = vunpack.c.l.b16 %v1713
    %v2042 = vunpack.c.h.b16 %v1713
    %v2043 = vunpack.c.l.b16 %v1714
    %v2044 = vunpack.c.h.b16 %v1714
    %v2045 = vunpack.c.l.b16 %v1715
    %v2046 = vunpack.c.h.b16 %v1715
    %v2047 = vunpack.c.l.b16 %v1716
    %v2048 = vunpack.c.h.b16 %v1716
    %v2049 = vunpack.c.l.b16 %v1717
    %v2050 = vunpack.c.h.b16 %v1717
    %v2051 = vunpack.c.l.b16 %v1718
    %v2052 = vunpack.c.h.b16 %v1718
    %v2053 = vunpack.c.l.b16 %v1719
    %v2054 = vunpack.c.h.b16 %v1719
    %v2055 = vunpack.c.l.b16 %v1720
    %v2056 = vunpack.c.h.b16 %v1720
    %v2057 = vunpack.c.l.b16 %v1721
    %v2058 = vunpack.c.h.b16 %v1721
    %v2059 = vunpack.c.l.b16 %v1722
    %v2060 = vunpack.c.h.b16 %v1722
    %v2061 = vunpack.c.l.b16 %v1723
    %v2062 = vunpack.c.h.b16 %v1723
    %v2063 = vunpack.c.l.b16 %v1724
    %v2064 = vunpack.c.h.b16 %v1724
    %v2065 = vunpack.c.l.b16 %v1725
    %v2066 = vunpack.c.h.b16 %v1725
    %v2067 = vunpack.c.l.b16 %v1726
    %v2068 = vunpack.c.h.b16 %v1726
    %v2069 = vunpack.c.l.b16 %v1727
    %v2070 = vunpack.c.h.b16 %v1727
    %v2071 = vunpack.c.l.b16 %v1728
    %v2072 = vunpack.c.h.b16 %v1728
    %v2073 = vunpack.c.l.b16 %v1729
    %v2074 = vunpack.c.h.b16 %v1729
    %v2075 = vunpack.c.l.b16 %v1730
    %v2076 = vunpack.c.h.b16 %v1730
    %v2077 = vunpack.c.l.b16 %v1731
    %v2078 = vunpack.c.h.b16 %v1731
    %v2079 = vunpack.c.l.b16 %v1732
    %v2080 = vunpack.c.h.b16 %v1732
    %v2081 = vunpack.c.l.b16 %v1733
    %v2082 = vunpack.c.h.b16 %v1733
    %v2083 = vunpack.c.l.b16 %v1734
    %v2084 = vunpack.c.h.b16 %v1734
    %v2085 = vunpack.c.l.b16 %v1735
    %v2086 = vunpack.c.h.b16 %v1735
    %v2087 = vunpack.c.l.b16 %v1736
    %v2088 = vunpack.c.h.b16 %v1736
    %v2089 = vunpack.c.l.b16 %v1737
    %v2090 = vunpack.c.h.b16 %v1737
    %v2091 = vunpack.c.l.b16 %v1738
    %v2092 = vunpack.c.h.b16 %v1738
    %v2093 = vunpack.c.l.b16 %v1739
    %v2094 = vunpack.c.h.b16 %v1739
    %v2095 = vunpack.c.l.b16 %v1740
    %v2096 = vunpack.c.h.b16 %v1740
    %v2097 = vunpack.c.l.b16 %v1741
    %v2098 = vunpack.c.h.b16 %v1741
    %v2099 = vunpack.c.l.b16 %v1742
    %v2100 = vunpack.c.h.b16 %v1742
    %v2101 = vunpack.c.l.b16 %v1743
    %v2102 = vunpack.c.h.b16 %v1743
    %v2103 = vunpack.c.l.b16 %v1744
    %v2104 = vunpack.c.h.b16 %v1744
    %v2105 = vunpack.c.l.b16 %v1745
    %v2106 = vunpack.c.h.b16 %v1745
    %v2107 = vunpack.c.l.b16 %v1746
    %v2108 = vunpack.c.h.b16 %v1746
    %v2109 = vunpack.c.l.b16 %v1747
    %v2110 = vunpack.c.h.b16 %v1747
    %v2111 = vunpack.c.l.b16 %v1748
    %v2112 = vunpack.c.h.b16 %v1748
    %v2113 = vunpack.c.l.b16 %v1749
    %v2114 = vunpack.c.h.b16 %v1749
    %v2115 = vunpack.c.l.b16 %v1750
    %v2116 = vunpack.c.h.b16 %v1750
    %v2117 = vunpack.c.l.b16 %v1751
    %v2118 = vunpack.c.h.b16 %v1751
    %v2119 = vunpack.c.l.b16 %v1752
    %v2120 = vunpack.c.h.b16 %v1752
    %v2121 = vunpack.c.l.b16 %v1753
    %v2122 = vunpack.c.h.b16 %v1753
    %v2123 = vunpack.c.l.b16 %v1754
    %v2124 = vunpack.c.h.b16 %v1754
    %v2125 = vunpack.c.l.b16 %v1755
    %v2126 = vunpack.c.h.b16 %v1755
    %v2127 = vunpack.c.l.b16 %v1756
    %v2128 = vunpack.c.h.b16 %v1756
    %v2129 = vunpack.c.l.b16 %v1757
    %v2130 = vunpack.c.h.b16 %v1757
    %v2131 = vunpack.c.l.b16 %v1758
    %v2132 = vunpack.c.h.b16 %v1758
    %v2133 = vunpack.c.l.b16 %v1759
    %v2134 = vunpack.c.h.b16 %v1759
    %v2135 = vunpack.c.l.b16 %v1760
    %v2136 = vunpack.c.h.b16 %v1760
    %v2137 = vunpack.c.l.b16 %v1761
    %v2138 = vunpack.c.h.b16 %v1761
    %v2139 = vunpack.c.l.b16 %v1762
    %v2140 = vunpack.c.h.b16 %v1762
    %v2141 = vunpack.c.l.b16 %v1763
    %v2142 = vunpack.c.h.b16 %v1763
    %v2143 = vunpack.c.l.b16 %v1764
    %v2144 = vunpack.c.h.b16 %v1764
    %v2145 = vunpack.c.l.b16 %v1765
    %v2146 = vunpack.c.h.b16 %v1765
    %v2147 = vunpack.c.l.b16 %v1766
    %v2148 = vunpack.c.h.b16 %v1766
    %v2149 = vunpack.c.l.b16 %v1767
    %v2150 = vunpack.c.h.b16 %v1767
    %v2151 = vunpack.c.l.b16 %v1768
    %v2152 = vunpack.c.h.b16 %v1768
    %v2153 = vunpack.c.l.b16 %v1769
    %v2154 = vunpack.c.h.b16 %v1769
    %v2155 = vunpack.c.l.b16 %v1770
    %v2156 = vunpack.c.h.b16 %v1770
    %v2157 = vunpack.c.l.b16 %v1771
    %v2158 = vunpack.c.h.b16 %v1771
    %v2159 = vunpack.c.l.b16 %v1772
    %v2160 = vunpack.c.h.b16 %v1772
    %v2161 = vunpack.c.l.b16 %v1773
    %v2162 = vunpack.c.h.b16 %v1773
    %v2163 = vunpack.c.l.b16 %v1774
    %v2164 = vunpack.c.h.b16 %v1774
    %v2165 = vunpack.c.l.b16 %v1775
    %v2166 = vunpack.c.h.b16 %v1775
    %v2167 = vunpack.c.l.b16 %v1776
    %v2168 = vunpack.c.h.b16 %v1776
    %v2169 = vunpack.c.l.b16 %v1777
    %v2170 = vunpack.c.h.b16 %v1777
    %v2171 = vunpack.c.l.b16 %v1778
    %v2172 = vunpack.c.h.b16 %v1778
    %v2173 = vunpack.c.l.b16 %v1779
    %v2174 = vunpack.c.h.b16 %v1779
    %v2175 = vunpack.c.l.b16 %v1780
    %v2176 = vunpack.c.h.b16 %v1780
    %v2177 = vunpack.c.l.b16 %v1781
    %v2178 = vunpack.c.h.b16 %v1781
    %v2179 = vunpack.c.l.b16 %v1782
    %v2180 = vunpack.c.h.b16 %v1782
    %v2181 = vunpack.c.l.b16 %v1783
    %v2182 = vunpack.c.h.b16 %v1783
    %v2183 = vunpack.c.l.b16 %v1784
    %v2184 = vunpack.c.h.b16 %v1784
    %v2185 = vunpack.c.l.b16 %v1785
    %v2186 = vunpack.c.h.b16 %v1785
    %v2187 = vunpack.c.l.b16 %v1786
    %v2188 = vunpack.c.h.b16 %v1786
    %v2189 = vunpack.c.l.b16 %v1787
    %v2190 = vunpack.c.h.b16 %v1787
    %v2191 = vunpack.c.l.b16 %v1788
    %v2192 = vunpack.c.h.b16 %v1788
    %v2193 = vunpack.c.l.b16 %v1789
    %v2194 = vunpack.c.h.b16 %v1789
    %v2195 = vunpack.c.l.b16 %v1790
    %v2196 = vunpack.c.h.b16 %v1790
    %v2197 = vunpack.c.l.b16 %v1791
    %v2198 = vunpack.c.h.b16 %v1791
    %v2199 = vunpack.c.l.b16 %v1792
    %v2200 = vunpack.c.h.b16 %v1792
    %v2201 = vunpack.c.l.b16 %v1793
    %v2202 = vunpack.c.h.b16 %v1793
    %v2203 = vunpack.c.l.b16 %v1794
    %v2204 = vunpack.c.h.b16 %v1794
    %v2205 = vunpack.c.l.b16 %v1795
    %v2206 = vunpack.c.h.b16 %v1795
    %v2207 = vunpack.c.l.b16 %v1796
    %v2208 = vunpack.c.h.b16 %v1796
    %v2209 = vunpack.c.l.b16 %v1797
    %v2210 = vunpack.c.h.b16 %v1797
    %v2211 = vunpack.c.l.b16 %v1798
    %v2212 = vunpack.c.h.b16 %v1798
    %v2213 = vunpack.c.l.b16 %v1799
    %v2214 = vunpack.c.h.b16 %v1799
    %v2215 = vunpack.c.l.b16 %v1800
    %v2216 = vunpack.c.h.b16 %v1800
    %v2217 = vunpack.c.l.b16 %v1801
    %v2218 = vunpack.c.h.b16 %v1801
    %v2219 = vunpack.c.l.b16 %v1802
    %v2220 = vunpack.c.h.b16 %v1802
    %v2221 = vunpack.c.l.b16 %v1803
    %v2222 = vunpack.c.h.b16 %v1803
    %v2223 = vunpack.c.l.b16 %v1804
    %v2224 = vunpack.c.h.b16 %v1804
    %v2225 = vunpack.c.l.b16 %v1805
    %v2226 = vunpack.c.h.b16 %v1805
    %v2227 = vunpack.c.l.b16 %v1806
    %v2228 = vunpack.c.h.b16 %v1806
    %v2229 = vunpack.c.l.b16 %v1807
    %v2230 = vunpack.c.h.b16 %v1807
    %v2231 = vunpack.c.l.b16 %v1808
    %v2232 = vunpack.c.h.b16 %v1808
    %v2233 = vunpack.c.l.b16 %v1809
    %v2234 = vunpack.c.h.b16 %v1809
    %v2235 = vunpack.c.l.b16 %v1810
    %v2236 = vunpack.c.h.b16 %v1810
    %v2237 = vunpack.c.l.b16 %v1811
    %v2238 = vunpack.c.h.b16 %v1811
    %v2239 = vunpack.c.l.b16 %v1812
    %v2240 = vunpack.c.h.b16 %v1812
    %v2241 = vunpack.c.l.b16 %v1813
    %v2242 = vunpack.c.h.b16 %v1813
    %v2243 = vunpack.c.l.b16 %v1814
    %v2244 = vunpack.c.h.b16 %v1814
    %v2245 = vunpack.c.l.b16 %v1815
    %v2246 = vunpack.c.h.b16 %v1815
    %v2247 = vunpack.c.l.b16 %v1816
    %v2248 = vunpack.c.h.b16 %v1816
    %v2249 = vunpack.c.l.b16 %v1817
    %v2250 = vunpack.c.h.b16 %v1817
    %v2251 = vunpack.c.l.b16 %v1818
    %v2252 = vunpack.c.h.b16 %v1818
    %v2253 = vunpack.c.l.b16 %v1819
    %v2254 = vunpack.c.h.b16 %v1819
    %v2255 = vunpack.c.l.b16 %v1820
    %v2256 = vunpack.c.h.b16 %v1820
    %v2257 = vunpack.c.l.b16 %v1821
    %v2258 = vunpack.c.h.b16 %v1821
    %v2259 = vunpack.c.l.b16 %v1822
    %v2260 = vunpack.c.h.b16 %v1822
    %v2261 = vunpack.c.l.b16 %v1823
    %v2262 = vunpack.c.h.b16 %v1823
    %v2263 = vunpack.c.l.b16 %v1824
    %v2264 = vunpack.c.h.b16 %v1824
    %v2265 = vunpack.c.l.b16 %v1825
    %v2266 = vunpack.c.h.b16 %v1825
    %v2267 = vunpack.c.l.b16 %v1826
    %v2268 = vunpack.c.h.b16 %v1826
    %v2269 = vunpack.c.l.b16 %v1827
    %v2270 = vunpack.c.h.b16 %v1827
    %v2271 = vunpack.c.l.b16 %v1828
    %v2272 = vunpack.c.h.b16 %v1828
    %v2273 = vpack.c.b16 %v1987, %v1985
    %v2274 = vpack.c.b16 %v1988, %v1986
    %v2275 = vpack.c.b16 %v1991, %v1989
    %v2276 = vpack.c.b16 %v1992, %v1990
    %v2277 = vpack.c.b16 %v1995, %v1993
    %v2278 = vpack.c.b16 %v1996, %v1994
    %v2279 = vpack.c.b16 %v1999, %v1997
    %v2280 = vpack.c.b16 %v2000, %v1998
    %v2281 = vpack.c.b16 %v2003, %v2001
    %v2282 = vpack.c.b16 %v2004, %v2002
    %v2283 = vpack.c.b16 %v2007, %v2005
    %v2284 = vpack.c.b16 %v2008, %v2006
    %v2285 = vpack.c.b16 %v2011, %v2009
    %v2286 = vpack.c.b16 %v2012, %v2010
    %v2287 = vpack.c.b16 %v2015, %v2013
    %v2288 = vpack.c.b16 %v2016, %v2014
    %v2289 = vpack.c.b16 %v2019, %v2017
    %v2290 = vpack.c.b16 %v2020, %v2018
    %v2291 = vpack.c.b16 %v2023, %v2021
    %v2292 = vpack.c.b16 %v2024, %v2022
    %v2293 = vpack.c.b16 %v2027, %v2025
    %v2294 = vpack.c.b16 %v2028, %v2026
    %v2295 = vpack.c.b16 %v2031, %v2029
    %v2296 = vpack.c.b16 %v2032, %v2030
    %v2297 = vpack.c.b16 %v2035, %v2033
    %v2298 = vpack.c.b16 %v2036, %v2034
    %v2299 = vpack.c.b16 %v2039, %v2037
    %v2300 = vpack.c.b16 %v2040, %v2038
    %v2301 = vpack.c.b16 %v2043, %v2041
    %v2302 = vpack.c.b16 %v2044, %v2042
    %v2303 = vpack.c.b16 %v2047, %v2045
    %v2304 = vpack.c.b16 %v2048, %v2046
    %v2305 = vpack.c.b16 %v2051, %v2049
    %v2306 = vpack.c.b16 %v2052, %v2050
    %v2307 = vpack.c.b16 %v2055, %v2053
    %v2308 = vpack.c.b16 %v2056, %v2054
    %v2309 = vpack.c.b16 %v2059, %v2057
    %v2310 = vpack.c.b16 %v2060, %v2058
    %v2311 = vpack.c.b16 %v2063, %v2061
    %v2312 = vpack.c.b16 %v2064, %v2062
    %v2313 = vpack.c.b16 %v2067, %v2065
    %v2314 = vpack.c.b16 %v2068, %v2066
    %v2315 = vpack.c.b16 %v2071, %v2069
    %v2316 = vpack.c.b16 %v2072, %v2070
    %v2317 = vpack.c.b16 %v2075, %v2073
    %v2318 = vpack.c.b16 %v2076, %v2074
    %v2319 = vpack.c.b16 %v2079, %v2077
    %v2320 = vpack.c.b16 %v2080, %v2078
    %v2321 = vpack.c.b16 %v2083, %v2081
    %v2322 = vpack.c.b16 %v2084, %v2082
    %v2323 = vpack.c.b16 %v2087, %v2085
    %v2324 = vpack.c.b16 %v2088, %v2086
    %v2325 = vpack.c.b16 %v2091, %v2089
    %v2326 = vpack.c.b16 %v2092, %v2090
    %v2327 = vpack.c.b16 %v2095, %v2093
    %v2328 = vpack.c.b16 %v2096, %v2094
    %v2329 = vpack.c.b16 %v2099, %v2097
    %v2330 = vpack.c.b16 %v2100, %v2098
    %v2331 = vpack.c.b16 %v2103, %v2101
    %v2332 = vpack.c.b16 %v2104, %v2102
    %v2333 = vpack.c.b16 %v2107, %v2105
    %v2334 = vpack.c.b16 %v2108, %v2106
    %v2335 = vpack.c.b16 %v2111, %v2109
    %v2336 = vpack.c.b16 %v2112, %v2110
    %v2337 = vpack.c.b16 %v2115, %v2113
    %v2338 = vpack.c.b16 %v2116, %v2114
    %v2339 = vpack.c.b16 %v2119, %v2117
    %v2340 = vpack.c.b16 %v2120, %v2118
    %v2341 = vpack.c.b16 %v2123, %v2121
    %v2342 = vpack.c.b16 %v2124, %v2122
    %v2343 = vpack.c.b16 %v2127, %v2125
    %v2344 = vpack.c.b16 %v2128, %v2126
    %v2345 = vpack.c.b16 %v2131, %v2129
    %v2346 = vpack.c.b16 %v2132, %v2130
    %v2347 = vpack.c.b16 %v2135, %v2133
    %v2348 = vpack.c.b16 %v2136, %v2134
    %v2349 = vpack.c.b16 %v2139, %v2137
    %v2350 = vpack.c.b16 %v2140, %v2138
    %v2351 = vpack.c.b16 %v2143, %v2141
    %v2352 = vpack.c.b16 %v2144, %v2142
    %v2353 = vpack.c.b16 %v2147, %v2145
    %v2354 = vpack.c.b16 %v2148, %v2146
    %v2355 = vpack.c.b16 %v2151, %v2149
    %v2356 = vpack.c.b16 %v2152, %v2150
    %v2357 = vpack.c.b16 %v2155, %v2153
    %v2358 = vpack.c.b16 %v2156, %v2154
    %v2359 = vpack.c.b16 %v2159, %v2157
    %v2360 = vpack.c.b16 %v2160, %v2158
    %v2361 = vpack.c.b16 %v2163, %v2161
    %v2362 = vpack.c.b16 %v2164, %v2162
    %v2363 = vpack.c.b16 %v2167, %v2165
    %v2364 = vpack.c.b16 %v2168, %v2166
    %v2365 = vpack.c.b16 %v2171, %v2169
    %v2366 = vpack.c.b16 %v2172, %v2170
    %v2367 = vpack.c.b16 %v2175, %v2173
    %v2368 = vpack.c.b16 %v2176, %v2174
    %v2369 = vpack.c.b16 %v2179, %v2177
    %v2370 = vpack.c.b16 %v2180, %v2178
    %v2371 = vpack.c.b16 %v2183, %v2181
    %v2372 = vpack.c.b16 %v2184, %v2182
    %v2373 = vpack.c.b16 %v2187, %v2185
    %v2374 = vpack.c.b16 %v2188, %v2186
    %v2375 = vpack.c.b16 %v2191, %v2189
    %v2376 = vpack.c.b16 %v2192, %v2190
    %v2377 = vpack.c.b16 %v2195, %v2193
    %v2378 = vpack.c.b16 %v2196, %v2194
    %v2379 = vpack.c.b16 %v2199, %v2197
    %v2380 = vpack.c.b16 %v2200, %v2198
    %v2381 = vpack.c.b16 %v2203, %v2201
    %v2382 = vpack.c.b16 %v2204, %v2202
    %v2383 = vpack.c.b16 %v2207, %v2205
    %v2384 = vpack.c.b16 %v2208, %v2206
    %v2385 = vpack.c.b16 %v2211, %v2209
    %v2386 = vpack.c.b16 %v2212, %v2210
    %v2387 = vpack.c.b16 %v2215, %v2213
    %v2388 = vpack.c.b16 %v2216, %v2214
    %v2389 = vpack.c.b16 %v2219, %v2217
    %v2390 = vpack.c.b16 %v2220, %v2218
    %v2391 = vpack.c.b16 %v2223, %v2221
    %v2392 = vpack.c.b16 %v2224, %v2222
    %v2393 = vpack.c.b16 %v2227, %v2225
    %v2394 = vpack.c.b16 %v2228, %v2226
    %v2395 = vpack.c.b16 %v2231, %v2229
    %v2396 = vpack.c.b16 %v2232, %v2230
    %v2397 = vpack.c.b16 %v2235, %v2233
    %v2398 = vpack.c.b16 %v2236, %v2234
    %v2399 = vpack.c.b16 %v2239, %v2237
    %v2400 = vpack.c.b16 %v2240, %v2238
    %v2401 = vpack.c.b16 %v2243, %v2241
    %v2402 = vpack.c.b16 %v2244, %v2242
    %v2403 = vpack.c.b16 %v2247, %v2245
    %v2404 = vpack.c.b16 %v2248, %v2246
    %v2405 = vpack.c.b16 %v2251, %v2249
    %v2406 = vpack.c.b16 %v2252, %v2250
    %v2407 = vpack.c.b16 %v2255, %v2253
    %v2408 = vpack.c.b16 %v2256, %v2254
    %v2409 = vpack.c.b16 %v2259, %v2257
    %v2410 = vpack.c.b16 %v2260, %v2258
    %v2411 = vpack.c.b16 %v2263, %v2261
    %v2412 = vpack.c.b16 %v2264, %v2262
    %v2413 = vpack.c.b16 %v2267, %v2265
    %v2414 = vpack.c.b16 %v2268, %v2266
    %v2415 = vpack.c.b16 %v2271, %v2269
    %v2416 = vpack.c.b16 %v2272, %v2270
    %2561 = vmatprep.subr.bf16.mxu0 %v2288
    %2562 = vmatpush1.bf16.msra.mxu0 %v2287
    %2563 = vmatprep.subr.bf16.mxu0 %v2286
    %2564 = vmatpush1.bf16.msra.mxu0 %v2285
    %2565 = vmatprep.subr.bf16.mxu0 %v2284
    %2566 = vmatpush1.bf16.msra.mxu0 %v2283
    %2567 = vmatprep.subr.bf16.mxu0 %v2282
    %2568 = vmatpush1.bf16.msra.mxu0 %v2281
    %2569 = vmatprep.subr.bf16.mxu0 %v2280
    %2570 = vmatpush1.bf16.msra.mxu0 %v2279
    %2571 = vmatprep.subr.bf16.mxu0 %v2278
    %2572 = vmatpush1.bf16.msra.mxu0 %v2277
    %2573 = vmatprep.subr.bf16.mxu0 %v2276
    %2574 = vmatpush1.bf16.msra.mxu0 %v2275
    %2575 = vmatprep.subr.bf16.mxu0 %v2274
    %2576 = vmatpush1.bf16.msra.mxu0 %v2273
    %2577 = vmatprep.subr.bf16.mxu0 %v2304
    %2578 = vmatpush2.bf16.msra.mxu0 %v2303
    %2579 = vmatprep.subr.bf16.mxu0 %v2302
    %2580 = vmatpush2.bf16.msra.mxu0 %v2301
    %2581 = vmatprep.subr.bf16.mxu0 %v2300
    %2582 = vmatpush2.bf16.msra.mxu0 %v2299
    %2583 = vmatprep.subr.bf16.mxu0 %v2298
    %2584 = vmatpush2.bf16.msra.mxu0 %v2297
    %2585 = vmatprep.subr.bf16.mxu0 %v2296
    %2586 = vmatpush2.bf16.msra.mxu0 %v2295
    %2587 = vmatprep.subr.bf16.mxu0 %v2294
    %2588 = vmatpush2.bf16.msra.mxu0 %v2293
    %2589 = vmatprep.subr.bf16.mxu0 %v2292
    %2590 = vmatpush2.bf16.msra.mxu0 %v2291
    %2591 = vmatprep.subr.bf16.mxu0 %v2290
    %2592 = vmatpush2.bf16.msra.mxu0 %v2289
    %2593 = vmatprep.mubr.bf16.mxu0 %v1551
    %2594 = vmatmul.mubr.bf16.gmra.mxu0 %v1535
    %v2595 = vpop.f32.mrf.mxu0
    %v2596 = vadd.f32 %v1834, %v2595
    %v2597 = vpop.f32.mrf.mxu0
    %v2598 = vadd.f32 %v1838, %v2597
    %v2599 = vpop.f32.mrf.mxu0
    %v2600 = vpop.f32.mrf.mxu0
    %2601 = vdwg.mxu0
    %2602 = vmatprep.subr.bf16.mxu0 %v2320
    %2603 = vmatpush1.bf16.msra.mxu0 %v2319
    %2604 = vmatprep.subr.bf16.mxu0 %v2318
    %2605 = vmatpush1.bf16.msra.mxu0 %v2317
    %2606 = vmatprep.subr.bf16.mxu0 %v2316
    %2607 = vmatpush1.bf16.msra.mxu0 %v2315
    %2608 = vmatprep.subr.bf16.mxu0 %v2314
    %2609 = vmatpush1.bf16.msra.mxu0 %v2313
    %2610 = vmatprep.subr.bf16.mxu0 %v2312
    %2611 = vmatpush1.bf16.msra.mxu0 %v2311
    %2612 = vmatprep.subr.bf16.mxu0 %v2310
    %2613 = vmatpush1.bf16.msra.mxu0 %v2309
    %2614 = vmatprep.subr.bf16.mxu0 %v2308
    %2615 = vmatpush1.bf16.msra.mxu0 %v2307
    %2616 = vmatprep.subr.bf16.mxu0 %v2306
    %2617 = vmatpush1.bf16.msra.mxu0 %v2305
    %2618 = vmatprep.subr.bf16.mxu0 %v2336
    %2619 = vmatpush2.bf16.msra.mxu0 %v2335
    %2620 = vmatprep.subr.bf16.mxu0 %v2334
    %2621 = vmatpush2.bf16.msra.mxu0 %v2333
    %2622 = vmatprep.subr.bf16.mxu0 %v2332
    %2623 = vmatpush2.bf16.msra.mxu0 %v2331
    %2624 = vmatprep.subr.bf16.mxu0 %v2330
    %2625 = vmatpush2.bf16.msra.mxu0 %v2329
    %2626 = vmatprep.subr.bf16.mxu0 %v2328
    %2627 = vmatpush2.bf16.msra.mxu0 %v2327
    %2628 = vmatprep.subr.bf16.mxu0 %v2326
    %2629 = vmatpush2.bf16.msra.mxu0 %v2325
    %2630 = vmatprep.subr.bf16.mxu0 %v2324
    %2631 = vmatpush2.bf16.msra.mxu0 %v2323
    %2632 = vmatprep.subr.bf16.mxu0 %v2322
    %2633 = vmatpush2.bf16.msra.mxu0 %v2321
    %2634 = vmatprep.mubr.bf16.mxu0 %v1668
    %2635 = vmatmul.mubr.bf16.gmra.mxu0 %v1565
    %v2636 = vpop.f32.mrf.mxu0
    %v2637 = vadd.f32 %v2596, %v2636
    %v2638 = vpop.f32.mrf.mxu0
    %v2639 = vadd.f32 %v2598, %v2638
    %v2640 = vpop.f32.mrf.mxu0
    %v2641 = vpop.f32.mrf.mxu0
    %2642 = vdwg.mxu0
    %2643 = vmatprep.subr.bf16.mxu0 %v2352
    %2644 = vmatpush1.bf16.msra.mxu0 %v2351
    %2645 = vmatprep.subr.bf16.mxu0 %v2350
    %2646 = vmatpush1.bf16.msra.mxu0 %v2349
    %2647 = vmatprep.subr.bf16.mxu0 %v2348
    %2648 = vmatpush1.bf16.msra.mxu0 %v2347
    %2649 = vmatprep.subr.bf16.mxu0 %v2346
    %2650 = vmatpush1.bf16.msra.mxu0 %v2345
    %2651 = vmatprep.subr.bf16.mxu0 %v2344
    %2652 = vmatpush1.bf16.msra.mxu0 %v2343
    %2653 = vmatprep.subr.bf16.mxu0 %v2342
    %2654 = vmatpush1.bf16.msra.mxu0 %v2341
    %2655 = vmatprep.subr.bf16.mxu0 %v2340
    %2656 = vmatpush1.bf16.msra.mxu0 %v2339
    %2657 = vmatprep.subr.bf16.mxu0 %v2338
    %2658 = vmatpush1.bf16.msra.mxu0 %v2337
    %2659 = vmatprep.subr.bf16.mxu0 %v2368
    %2660 = vmatpush2.bf16.msra.mxu0 %v2367
    %2661 = vmatprep.subr.bf16.mxu0 %v2366
    %2662 = vmatpush2.bf16.msra.mxu0 %v2365
    %2663 = vmatprep.subr.bf16.mxu0 %v2364
    %2664 = vmatpush2.bf16.msra.mxu0 %v2363
    %2665 = vmatprep.subr.bf16.mxu0 %v2362
    %2666 = vmatpush2.bf16.msra.mxu0 %v2361
    %2667 = vmatprep.subr.bf16.mxu0 %v2360
    %2668 = vmatpush2.bf16.msra.mxu0 %v2359
    %2669 = vmatprep.subr.bf16.mxu0 %v2358
    %2670 = vmatpush2.bf16.msra.mxu0 %v2357
    %2671 = vmatprep.subr.bf16.mxu0 %v2356
    %2672 = vmatpush2.bf16.msra.mxu0 %v2355
    %2673 = vmatprep.subr.bf16.mxu0 %v2354
    %2674 = vmatpush2.bf16.msra.mxu0 %v2353
    %2675 = vmatprep.mubr.bf16.mxu0 %v1674
    %2676 = vmatmul.mubr.bf16.gmra.mxu0 %v1671
    %v2677 = vpop.f32.mrf.mxu0
    %v2678 = vadd.f32 %v2637, %v2677
    %v2679 = vpop.f32.mrf.mxu0
    %v2680 = vadd.f32 %v2639, %v2679
    %v2681 = vpop.f32.mrf.mxu0
    %v2682 = vpop.f32.mrf.mxu0
    %2683 = vdwg.mxu0
    %2684 = vmatprep.subr.bf16.mxu0 %v2384
    %2685 = vmatpush1.bf16.msra.mxu0 %v2383
    %2686 = vmatprep.subr.bf16.mxu0 %v2382
    %2687 = vmatpush1.bf16.msra.mxu0 %v2381
    %2688 = vmatprep.subr.bf16.mxu0 %v2380
    %2689 = vmatpush1.bf16.msra.mxu0 %v2379
    %2690 = vmatprep.subr.bf16.mxu0 %v2378
    %2691 = vmatpush1.bf16.msra.mxu0 %v2377
    %2692 = vmatprep.subr.bf16.mxu0 %v2376
    %2693 = vmatpush1.bf16.msra.mxu0 %v2375
    %2694 = vmatprep.subr.bf16.mxu0 %v2374
    %2695 = vmatpush1.bf16.msra.mxu0 %v2373
    %2696 = vmatprep.subr.bf16.mxu0 %v2372
    %2697 = vmatpush1.bf16.msra.mxu0 %v2371
    %2698 = vmatprep.subr.bf16.mxu0 %v2370
    %2699 = vmatpush1.bf16.msra.mxu0 %v2369
    %2700 = vmatprep.subr.bf16.mxu0 %v2400
    %2701 = vmatpush2.bf16.msra.mxu0 %v2399
    %2702 = vmatprep.subr.bf16.mxu0 %v2398
    %2703 = vmatpush2.bf16.msra.mxu0 %v2397
    %2704 = vmatprep.subr.bf16.mxu0 %v2396
    %2705 = vmatpush2.bf16.msra.mxu0 %v2395
    %2706 = vmatprep.subr.bf16.mxu0 %v2394
    %2707 = vmatpush2.bf16.msra.mxu0 %v2393
    %2708 = vmatprep.subr.bf16.mxu0 %v2392
    %2709 = vmatpush2.bf16.msra.mxu0 %v2391
    %2710 = vmatprep.subr.bf16.mxu0 %v2390
    %2711 = vmatpush2.bf16.msra.mxu0 %v2389
    %2712 = vmatprep.subr.bf16.mxu0 %v2388
    %2713 = vmatpush2.bf16.msra.mxu0 %v2387
    %2714 = vmatprep.subr.bf16.mxu0 %v2386
    %2715 = vmatpush2.bf16.msra.mxu0 %v2385
    %2716 = vmatprep.mubr.bf16.mxu0 %v1680
    %2717 = vmatmul.mubr.bf16.gmra.mxu0 %v1677
    %v2718 = vpop.f32.mrf.mxu0
    %v2719 = vadd.f32 %v2678, %v2718
    %v2720 = vpop.f32.mrf.mxu0
    %v2721 = vadd.f32 %v2680, %v2720
    %v2722 = vpop.f32.mrf.mxu0
    %v2723 = vpop.f32.mrf.mxu0
    %2724 = vdwg.mxu0
    %2725 = vmatprep.subr.bf16.mxu0 %v2416
    %2726 = vmatpush1.bf16.msra.mxu0 %v2415
    %2727 = vmatprep.subr.bf16.mxu0 %v2414
    %2728 = vmatpush1.bf16.msra.mxu0 %v2413
    %2729 = vmatprep.subr.bf16.mxu0 %v2412
    %2730 = vmatpush1.bf16.msra.mxu0 %v2411
    %2731 = vmatprep.subr.bf16.mxu0 %v2410
    %2732 = vmatpush1.bf16.msra.mxu0 %v2409
    %2733 = vmatprep.subr.bf16.mxu0 %v2408
    %2734 = vmatpush1.bf16.msra.mxu0 %v2407
    %2735 = vmatprep.subr.bf16.mxu0 %v2406
    %2736 = vmatpush1.bf16.msra.mxu0 %v2405
    %2737 = vmatprep.subr.bf16.mxu0 %v2404
    %2738 = vmatpush1.bf16.msra.mxu0 %v2403
    %2739 = vmatprep.subr.bf16.mxu0 %v2402
    %2740 = vmatpush1.bf16.msra.mxu0 %v2401
    %2741 = vmatprep.subr.bf16.mxu0 0
    %2742 = vmatpush2.bf16.msra.mxu0 0
    %2743 = vmatprep.subr.bf16.mxu0 0
    %2744 = vmatpush2.bf16.msra.mxu0 0
    %2745 = vmatprep.subr.bf16.mxu0 0
    %2746 = vmatpush2.bf16.msra.mxu0 0
    %2747 = vmatprep.subr.bf16.mxu0 0
    %2748 = vmatpush2.bf16.msra.mxu0 0
    %2749 = vmatprep.subr.bf16.mxu0 0
    %2750 = vmatpush2.bf16.msra.mxu0 0
    %2751 = vmatprep.subr.bf16.mxu0 0
    %2752 = vmatpush2.bf16.msra.mxu0 0
    %2753 = vmatprep.subr.bf16.mxu0 0
    %2754 = vmatpush2.bf16.msra.mxu0 0
    %2755 = vmatprep.subr.bf16.mxu0 0
    %2756 = vmatpush2.bf16.msra.mxu0 0
    %2757 = vmatprep.mubr.bf16.mxu0 0
    %2758 = vmatmul.mubr.bf16.gmra.mxu0 %v1683
    %v2759 = vpop.f32.mrf.mxu0
    %v2760 = vadd.f32 %v2719, %v2759
    %v2761 = vpop.f32.mrf.mxu0
    %v2762 = vadd.f32 %v2721, %v2761
    %v2763 = vpop.f32.mrf.mxu0
    %v2764 = vpop.f32.mrf.mxu0
    %2765 = vdwg.mxu0
    %v2766 = vmax.f32 %v2760, 0.0
    %v2767 = vmax.f32 %v2762, 0.0
    %v2768 = vpack.c.bf16 %v2766, %v2766
    %v2769 = vpack.c.bf16 %v2767, %v2767
    %v2770 = vld [vmem:[%s5] sm:$0xf]
    %v2771 = vld [vmem:[%s5 + $0x4] sm:$0xf]
    %v2772 = vld [vmem:[%s5 + $0x8] sm:$0xf]
    %v2773 = vld [vmem:[%s5 + $0xc] sm:$0xf]
    %v2774 = vld [vmem:[%s5 + $0x10] sm:$0xf]
    %v2775 = vld [vmem:[%s5 + $0x14] sm:$0xf]
    %v2776 = vld [vmem:[%s5 + $0x18] sm:$0xf]
    %v2777 = vld [vmem:[%s5 + $0x1c] sm:$0xf]
    %v2778 = vld [vmem:[%s5 + $0x20] sm:$0xf]
    %v2779 = vld [vmem:[%s5 + $0x24] sm:$0xf]
    %v2780 = vld [vmem:[%s5 + $0x28] sm:$0xf]
    %v2781 = vld [vmem:[%s5 + $0x2c] sm:$0xf]
    %v2782 = vld [vmem:[%s5 + $0x30] sm:$0xf]
    %v2783 = vld [vmem:[%s5 + $0x34] sm:$0xf]
    %v2784 = vld [vmem:[%s5 + $0x38] sm:$0xf]
    %v2785 = vld [vmem:[%s5 + $0x3c] sm:$0xf]
    %v2786 = vld [vmem:[%s5 + $0x40] sm:$0xf]
    %v2787 = vld [vmem:[%s5 + $0x44] sm:$0xf]
    %v2788 = vld [vmem:[%s6] sm:$0x1]
    %v2790 = vlaneseq
    %v2791 = vshrl.u32 %v2790, 7
    %v2792 = vsub.s32 0, %v2791
    %v2793 = vrot.slane %v2788, %v2792
    %v2813 = vunpack.c.l.b16 %v2770
    %v2814 = vunpack.c.l.b16 %v2771
    %v2815 = vunpack.c.l.b16 %v2772
    %v2816 = vunpack.c.l.b16 %v2773
    %v2817 = vunpack.c.l.b16 %v2774
    %v2818 = vunpack.c.l.b16 %v2775
    %v2819 = vunpack.c.l.b16 %v2776
    %v2820 = vunpack.c.l.b16 %v2777
    %v2821 = vunpack.c.l.b16 %v2778
    %v2822 = vunpack.c.l.b16 %v2779
    %v2823 = vunpack.c.l.b16 %v2780
    %v2824 = vunpack.c.l.b16 %v2781
    %v2825 = vunpack.c.l.b16 %v2782
    %v2826 = vunpack.c.l.b16 %v2783
    %v2827 = vunpack.c.l.b16 %v2784
    %v2828 = vunpack.c.l.b16 %v2785
    %v2829 = vunpack.c.l.b16 %v2786
    %v2830 = vunpack.c.l.b16 %v2787
    %v2831 = vpack.c.b16 %v2814, %v2813
    %v2832 = vpack.c.b16 %v2816, %v2815
    %v2833 = vpack.c.b16 %v2818, %v2817
    %v2834 = vpack.c.b16 %v2820, %v2819
    %v2835 = vpack.c.b16 %v2822, %v2821
    %v2836 = vpack.c.b16 %v2824, %v2823
    %v2837 = vpack.c.b16 %v2826, %v2825
    %v2838 = vpack.c.b16 %v2828, %v2827
    %v2839 = vpack.c.b16 %v2830, %v2829
    %vm2849 = vcmask 130048
    %v2851 = vsel %vm2849, %v2769, 0
    %2853 = vmatprep.subr.bf16.mxu0 0
    %2854 = vmatpush1.bf16.msra.mxu0 %v2838
    %2855 = vmatprep.subr.bf16.mxu0 0
    %2856 = vmatpush1.bf16.msra.mxu0 %v2837
    %2857 = vmatprep.subr.bf16.mxu0 0
    %2858 = vmatpush1.bf16.msra.mxu0 %v2836
    %2859 = vmatprep.subr.bf16.mxu0 0
    %2860 = vmatpush1.bf16.msra.mxu0 %v2835
    %2861 = vmatprep.subr.bf16.mxu0 0
    %2862 = vmatpush1.bf16.msra.mxu0 %v2834
    %2863 = vmatprep.subr.bf16.mxu0 0
    %2864 = vmatpush1.bf16.msra.mxu0 %v2833
    %2865 = vmatprep.subr.bf16.mxu0 0
    %2866 = vmatpush1.bf16.msra.mxu0 %v2832
    %2867 = vmatprep.subr.bf16.mxu0 0
    %2868 = vmatpush1.bf16.msra.mxu0 %v2831
    %2869 = vmatprep.subr.bf16.mxu0 0
    %2870 = vmatpush2.bf16.msra.mxu0 0
    %2871 = vmatprep.subr.bf16.mxu0 0
    %2872 = vmatpush2.bf16.msra.mxu0 0
    %2873 = vmatprep.subr.bf16.mxu0 0
    %2874 = vmatpush2.bf16.msra.mxu0 0
    %2875 = vmatprep.subr.bf16.mxu0 0
    %2876 = vmatpush2.bf16.msra.mxu0 0
    %2877 = vmatprep.subr.bf16.mxu0 0
    %2878 = vmatpush2.bf16.msra.mxu0 0
    %2879 = vmatprep.subr.bf16.mxu0 0
    %2880 = vmatpush2.bf16.msra.mxu0 0
    %2881 = vmatprep.subr.bf16.mxu0 0
    %2882 = vmatpush2.bf16.msra.mxu0 0
    %2883 = vmatprep.subr.bf16.mxu0 0
    %2884 = vmatpush2.bf16.msra.mxu0 %v2839
    %2885 = vmatprep.mubr.bf16.mxu0 %v2851
    %2886 = vmatmul.mubr.bf16.gmra.mxu0 %v2768
    %v2887 = vpop.f32.mrf.mxu0
    %v2888 = vadd.f32 %v2793, %v2887
    %v2889 = vpop.f32.mrf.mxu0
    %v2890 = vpop.f32.mrf.mxu0
    %v2891 = vpop.f32.mrf.mxu0
    %2892 = vdwg.mxu0
    %v2893 = vmax.f32 %v2888, 0.0
    %v2894 = vpack.c.bf16 %v2893, %v2893
    %v2895 = vld [vmem:[%s7] sm:$0xf]
    %v2896 = vld [vmem:[%s7 + $0x4] sm:$0xf]
    %v2897 = vld [vmem:[%s8] sm:$0x1]
    %v2899 = vlaneseq
    %v2900 = vshrl.u32 %v2899, 7
    %v2901 = vsub.s32 0, %v2900
    %v2902 = vrot.slane %v2897, %v2901
    %v2906 = vunpack.c.l.b16 %v2895
    %v2907 = vunpack.c.l.b16 %v2896
    %v2908 = vpack.c.b16 %v2907, %v2906
    %v2911 = vsel %vm2849, %v2894, 0
    %2913 = vmatprep.subr.bf16.mxu0 0
    %2914 = vmatpush1.bf16.msra.mxu0 0
    %2915 = vmatprep.subr.bf16.mxu0 0
    %2916 = vmatpush1.bf16.msra.mxu0 0
    %2917 = vmatprep.subr.bf16.mxu0 0
    %2918 = vmatpush1.bf16.msra.mxu0 0
    %2919 = vmatprep.subr.bf16.mxu0 0
    %2920 = vmatpush1.bf16.msra.mxu0 0
    %2921 = vmatprep.subr.bf16.mxu0 0
    %2922 = vmatpush1.bf16.msra.mxu0 0
    %2923 = vmatprep.subr.bf16.mxu0 0
    %2924 = vmatpush1.bf16.msra.mxu0 0
    %2925 = vmatprep.subr.bf16.mxu0 0
    %2926 = vmatpush1.bf16.msra.mxu0 0
    %2927 = vmatprep.subr.bf16.mxu0 0
    %2928 = vmatpush1.bf16.msra.mxu0 %v2908
    %2929 = vmatprep.subr.bf16.mxu0 0
    %2930 = vmatpush2.bf16.msra.mxu0 0
    %2931 = vmatprep.subr.bf16.mxu0 0
    %2932 = vmatpush2.bf16.msra.mxu0 0
    %2933 = vmatprep.subr.bf16.mxu0 0
    %2934 = vmatpush2.bf16.msra.mxu0 0
    %2935 = vmatprep.subr.bf16.mxu0 0
    %2936 = vmatpush2.bf16.msra.mxu0 0
    %2937 = vmatprep.subr.bf16.mxu0 0
    %2938 = vmatpush2.bf16.msra.mxu0 0
    %2939 = vmatprep.subr.bf16.mxu0 0
    %2940 = vmatpush2.bf16.msra.mxu0 0
    %2941 = vmatprep.subr.bf16.mxu0 0
    %2942 = vmatpush2.bf16.msra.mxu0 0
    %2943 = vmatprep.subr.bf16.mxu0 0
    %2944 = vmatpush2.bf16.msra.mxu0 0
    %2945 = vmatprep.mubr.bf16.mxu0 0
    %2946 = vmatmul.mubr.bf16.gmra.mxu0 %v2911
    %v2947 = vpop.f32.mrf.mxu0
    %v2948 = vadd.f32 %v2902, %v2947
    %v2949 = vpop.f32.mrf.mxu0
    %v2950 = vpop.f32.mrf.mxu0
    %v2951 = vpop.f32.mrf.mxu0
    %2952 = vdwg.mxu0
    %v2953 = vmax.f32 %v2948, 0.0
    %v2954 = vpack.c.bf16 %v2953, %v2953
    %v2955 = vld [vmem:[%s9] sm:$0xf]
    %v2956 = vld [vmem:[%s9 + $0x4] sm:$0xf]
    %v2957 = vld [vmem:[%s9 + $0x8] sm:$0xf]
    %v2958 = vld [vmem:[%s9 + $0xc] sm:$0xf]
    %v2959 = vld [vmem:[%s10] sm:$0x1]
    %v2961 = vlaneseq
    %v2962 = vshrl.u32 %v2961, 7
    %v2963 = vsub.s32 0, %v2962
    %v2964 = vrot.slane %v2959, %v2963
    %v2970 = vunpack.c.l.b16 %v2955
    %v2971 = vunpack.c.l.b16 %v2956
    %v2972 = vunpack.c.l.b16 %v2957
    %v2973 = vunpack.c.l.b16 %v2958
    %v2974 = vpack.c.b16 %v2971, %v2970
    %v2975 = vpack.c.b16 %v2973, %v2972
    %v2979 = vsel %vm1526, %v2954, 0
    %2981 = vmatprep.subr.bf16.mxu0 0
    %2982 = vmatpush1.bf16.msra.mxu0 0
    %2983 = vmatprep.subr.bf16.mxu0 0
    %2984 = vmatpush1.bf16.msra.mxu0 0
    %2985 = vmatprep.subr.bf16.mxu0 0
    %2986 = vmatpush1.bf16.msra.mxu0 0
    %2987 = vmatprep.subr.bf16.mxu0 0
    %2988 = vmatpush1.bf16.msra.mxu0 0
    %2989 = vmatprep.subr.bf16.mxu0 0
    %2990 = vmatpush1.bf16.msra.mxu0 0
    %2991 = vmatprep.subr.bf16.mxu0 0
    %2992 = vmatpush1.bf16.msra.mxu0 0
    %2993 = vmatprep.subr.bf16.mxu0 0
    %2994 = vmatpush1.bf16.msra.mxu0 %v2975
    %2995 = vmatprep.subr.bf16.mxu0 0
    %2996 = vmatpush1.bf16.msra.mxu0 %v2974
    %2997 = vmatprep.subr.bf16.mxu0 0
    %2998 = vmatpush2.bf16.msra.mxu0 0
    %2999 = vmatprep.subr.bf16.mxu0 0
    %3000 = vmatpush2.bf16.msra.mxu0 0
    %3001 = vmatprep.subr.bf16.mxu0 0
    %3002 = vmatpush2.bf16.msra.mxu0 0
    %3003 = vmatprep.subr.bf16.mxu0 0
    %3004 = vmatpush2.bf16.msra.mxu0 0
    %3005 = vmatprep.subr.bf16.mxu0 0
    %3006 = vmatpush2.bf16.msra.mxu0 0
    %3007 = vmatprep.subr.bf16.mxu0 0
    %3008 = vmatpush2.bf16.msra.mxu0 0
    %3009 = vmatprep.subr.bf16.mxu0 0
    %3010 = vmatpush2.bf16.msra.mxu0 0
    %3011 = vmatprep.subr.bf16.mxu0 0
    %3012 = vmatpush2.bf16.msra.mxu0 0
    %3013 = vmatprep.mubr.bf16.mxu0 0
    %3014 = vmatmul.mubr.bf16.gmra.mxu0 %v2979
    %v3015 = vpop.f32.mrf.mxu0
    %v3016 = vadd.f32 %v2964, %v3015
    %v3017 = vpop.f32.mrf.mxu0
    %v3018 = vpop.f32.mrf.mxu0
    %v3019 = vpop.f32.mrf.mxu0
    %3020 = vdwg.mxu0
    %v3021 = vmax.f32 %v3016, 0.0
    %vm3022 = vcmask 254976
    %3023 = vst.msk [vmem:[#allocation2] sm:$0x3] %vm3022, %v3021
    // Predicated region
    $region46: #{cnn_forward.1} parent=1 // pred_check
      _
    $region47: #{cnn_forward.1} parent=1 // pred_check_branch
      %3025 = sbr.rel (0) target = $region49
    $region48: #{cnn_forward.1} parent=1 // pred_region
      %s3027 = ssub.s32 32, 32
      %3028 = vsyncadd [#allocation3], %s3027
      %s3030 = sshll.u32 [#allocation2], 4
      %s3031 = int_to_ptr.vmem [resolvable:$true] %s3030
      %3033 = dma.vmem_to_hbm [thread:$0]  %s3031, 32, %s11, [#allocation3]
    $region49: #{cnn_forward.1} parent=1 // pred_fallthru
      _
    // Predicated region
    $region50: #{cnn_forward.1} parent=1 // pred_check
      _
    $region51: #{cnn_forward.1} parent=1 // pred_check_branch
      %3035 = sbr.rel (0) target = $region53
    $region52: #{cnn_forward.1} parent=1 // pred_region
      %3036 = dma.done [#allocation3], 32
    $region53: #{cnn_forward.1} parent=1 // pred_fallthru
      _
    %3037 = vsyncpa [#allocation3], 1

</llo_original>
